<compile_context>
chip_gen: v7x
topology: tpu7x:2x2x1
jax: 0.10.0
libtpu: 0.0.40
codegen_flags: <defaults>
</compile_context>

<pallas_src>
import numpy as np
import jax
import jax.numpy as jnp
from jax.experimental import pallas as pl
from jax.experimental.pallas import tpu as pltpu

# ---- args (mirrors PatchEmbedding.__init__) ----
VOCAB_CODE = 50          # args.vocab_code
EMBED_DIM = 16           # args.embedding_dim
CLASS_NUM = 1            # args.class_num   (.squeeze(1) implies 1)
NUM_FILTERS = 8          # args.num_filters (Co)
FILTER_SIZES = (1, 2)    # args.filter_sizes (Ks)
HIDDEN_UNITS = 32        # args.hidden_units
FEAT_DIM = NUM_FILTERS * len(FILTER_SIZES)


def _a8(n):
    return (n + 7) // 8 * 8


# ---------------- host-side weight packing (one DMA for every parameter) ----------------

def _pack_params(params):
    """Pack every weight/bias into one f32 (R, C) buffer.

    Row layout (ranges 8-aligned so in-kernel slices start on sublane tiles):
      [0, V)               : W_line_eff = embed @ column-packed line-conv weights (V, PC)
      [r_mult, r_mult+F)   : column-packed multi-line-conv weights                (F, PC)
      [r_w1,   r_w1+F)     : fc1 weight                                           (F, HID)
      [r_w2,   r_w2+HID)   : fc2 weight                                           (HID, CLS)
      r_bias+0 / +1 /+2 /+3: line biases (F) / multi biases (F) / b1 (HID) / b2 (CLS)
    """
    embed = params["embed"]
    convs_line = params["convs_line"]
    convs_multi = params["convs_multi"]
    V, D = embed.shape
    Co = convs_line[0][0].shape[2]
    Ks = tuple(int(w.shape[0]) for (w, _) in convs_line)
    F = len(Ks) * Co
    PC = sum(Ks) * Co
    w1, b1, w2, b2 = params["w1"], params["b1"], params["w2"], params["b2"]
    HID = w1.shape[1]
    CLS = w2.shape[1]

    # column-pack: for each branch, for each tap, a (Din, Co) block of lanes
    w_line_packed = jnp.concatenate(
        [w[k] for (w, _) in convs_line for k in range(w.shape[0])], axis=1)    # (D, PC)
    w_line_eff = jnp.dot(embed, w_line_packed)                                 # (V, PC) embed folded
    w_mult_packed = jnp.concatenate(
        [w[k] for (w, _) in convs_multi for k in range(w.shape[0])], axis=1)   # (F, PC)
    b_line = jnp.concatenate([b for (_, b) in convs_line], axis=1)             # (1, F)
    b_mult = jnp.concatenate([b for (_, b) in convs_multi], axis=1)            # (1, F)

    r_mult = _a8(V)
    r_w1 = r_mult + _a8(F)
    r_w2 = r_w1 + _a8(F)
    r_bias = r_w2 + _a8(HID)
    R = _a8(r_bias + 4)
    C = max(PC, HID, F, CLS)

    buf = jnp.zeros((R, C), jnp.float32)
    buf = buf.at[0:V, 0:PC].set(w_line_eff)
    buf = buf.at[r_mult:r_mult + F, 0:PC].set(w_mult_packed)
    buf = buf.at[r_w1:r_w1 + F, 0:HID].set(w1)
    buf = buf.at[r_w2:r_w2 + HID, 0:CLS].set(w2)
    buf = buf.at[r_bias + 0, 0:F].set(b_line[0])
    buf = buf.at[r_bias + 1, 0:F].set(b_mult[0])
    buf = buf.at[r_bias + 2, 0:HID].set(b1[0])
    buf = buf.at[r_bias + 3, 0:CLS].set(b2[0])

    layout = dict(V=V, Co=Co, Ks=Ks, F=F, PC=PC, HID=HID, CLS=CLS,
                  r_mult=r_mult, r_w1=r_w1, r_w2=r_w2, r_bias=r_bias, R=R, C=C)
    return buf, layout


# ---------------- fused Pallas kernel ----------------

def _make_fused_kernel(bt, H, L, T, lay):
    V, Co, Ks = lay["V"], lay["Co"], lay["Ks"]
    F, PC, HID, CLS = lay["F"], lay["PC"], lay["HID"], lay["CLS"]
    r_mult, r_w1, r_w2, r_bias = lay["r_mult"], lay["r_w1"], lay["r_w2"], lay["r_bias"]
    Q = 2 * H * L              # stacked (added, removed) lines per batch element
    n_line = H * L             # multi-line conv length (H == 1)
    rows = bt * Q              # line-stage rows per grid step

    def kernel(ids_ref, w_ref, o_ref):
        # -- unpack the single packed weight buffer (static, 8-aligned slices) --
        w_line_eff = w_ref[0:V, 0:PC]                 # (V, PC)   embedding folded in
        w_mult = w_ref[r_mult:r_mult + F, 0:PC]       # (F, PC)
        w1 = w_ref[r_w1:r_w1 + F, 0:HID]              # (F, HID)
        w2 = w_ref[r_w2:r_w2 + HID, 0:CLS]            # (HID, CLS)
        b_line = w_ref[r_bias + 0:r_bias + 1, 0:F]    # (1, F)
        b_mult = w_ref[r_bias + 1:r_bias + 2, 0:F]    # (1, F)
        b1 = w_ref[r_bias + 2:r_bias + 3, 0:HID]      # (1, HID)
        b2 = w_ref[r_bias + 3:r_bias + 4, 0:CLS]      # (1, CLS)

        ids = ids_ref[...]                                               # (bt, Q, T) int32
        lanes = jax.lax.broadcasted_iota(jnp.int32, (bt, Q, V), 2)

        # -- line stage: per token column, one one-hot matmul against the
        #    embed-folded, column-packed line-conv weights --
        s = []
        for t in range(T):
            onehot = (lanes == ids[:, :, t:t + 1]).astype(jnp.float32)   # (bt, Q, V)
            onehot = onehot.reshape(rows, V)                             # lane dim unchanged
            s.append(jnp.dot(onehot, w_line_eff,
                             preferred_element_type=jnp.float32))        # (rows, PC)

        # conv-over-tokens + maxpool + (hoisted) bias + relu; taps = static lane slices
        line_feats = []
        col = 0
        for i, K in enumerate(Ks):
            pooled = None
            for t0 in range(T - K + 1):
                acc = None
                for k in range(K):
                    blk = s[t0 + k][:, col + k * Co: col + (k + 1) * Co]
                    acc = blk if acc is None else acc + blk
                pooled = acc if pooled is None else jnp.maximum(pooled, acc)
            bias = b_line[:, i * Co:(i + 1) * Co]                        # (1, Co)
            line_feats.append(jnp.maximum(pooled + bias, 0.0))           # (rows, Co)
            col += K * Co

        # -- multi-line stage: one matmul per line-feature part (branch concat is
        #    folded into row slices of the packed weight) --
        p = None
        for i, f in enumerate(line_feats):
            contrib = jnp.dot(f, w_mult[i * Co:(i + 1) * Co, :],
                              preferred_element_type=jnp.float32)        # (rows, PC)
            p = contrib if p is None else p + contrib
        p3 = p.reshape(bt * 2, n_line, PC)                               # lane dim unchanged

        diff_feats = []
        col = 0
        for i, K in enumerate(Ks):
            l_out = n_line - K + 1
            acc = None
            for k in range(K):
                blk = p3[:, k:k + l_out, col + k * Co: col + (k + 1) * Co]
                acc = blk if acc is None else acc + blk                  # (2*bt, l_out, Co)
            pooled = jnp.max(acc, axis=1)                                # (2*bt, Co)
            bias = b_mult[:, i * Co:(i + 1) * Co]
            f = jnp.maximum(pooled + bias, 0.0)                          # (2*bt, Co)
            f = f.reshape(bt, 2, Co)                                     # row = b*2 + path
            diff_feats.append(f[:, 0, :] - f[:, 1, :])                   # added - removed
            col += K * Co

        # -- fc1 (branch concat folded into w1 row slices) -> relu -> fc2 -> sigmoid --
        h = None
        for i, d in enumerate(diff_feats):
            contrib = jnp.dot(d, w1[i * Co:(i + 1) * Co, :],
                              preferred_element_type=jnp.float32)
            h = contrib if h is None else h + contrib
        h = jnp.maximum(h + b1, 0.0)                                     # (bt, HID)
        o = jnp.dot(h, w2, preferred_element_type=jnp.float32) + b2      # (bt, CLS)
        o_ref[...] = 1.0 / (1.0 + jnp.exp(-o))                           # exact sigmoid

    return kernel


# ---------------- wrapper ----------------

def patch_embedding_forward(params, added_code, removed_code, *, batch_tile=8):
    B, H, L, T = added_code.shape
    assert H == 1, "torch reshape in forward_code assumes n_hunk == 1"
    wpack, lay = _pack_params(params)
    Q = 2 * H * L
    CLS = lay["CLS"]

    # Stack added/removed along rows (single trace / single DMA), lane-dense ids.
    # Clip out-of-range ids the way the JAX gather reference clamps them.
    ids = jnp.stack([added_code, removed_code], axis=1).astype(jnp.int32)
    ids = jnp.clip(ids, 0, lay["V"] - 1).reshape(B, Q, T)

    # One grid step per batch tile; "parallel" lets megacore (v7x) split steps.
    bt = batch_tile if (B > batch_tile and B % batch_tile == 0) else B
    grid = (B // bt,)

    kernel = _make_fused_kernel(bt, H, L, T, lay)
    out = pl.pallas_call(
        kernel,
        out_shape=jax.ShapeDtypeStruct((B, CLS), jnp.float32),
        grid=grid,
        in_specs=[
            pl.BlockSpec((bt, Q, T), lambda i: (i, 0, 0)),
            pl.BlockSpec((lay["R"], lay["C"]), lambda i: (0, 0)),   # resident weights
        ],
        out_specs=pl.BlockSpec((bt, CLS), lambda i: (i, 0)),
        compiler_params=pltpu.CompilerParams(dimension_semantics=("parallel",)),
    )(ids, wpack)

    if CLS == 1:                                  # mimic torch .squeeze(1)
        out = out[:, 0]
    return out


# ---------------- plain-JAX reference (for correctness check) ----------------

def _ref_conv_branch(x, w, b):
    K = w.shape[0]
    T_out = x.shape[1] - K + 1
    s = sum(jnp.einsum("ntd,dc->ntc", x[:, k:k + T_out, :], w[k]) for k in range(K))
    s = jnp.maximum(s + b.reshape(1, 1, -1), 0.0)
    return jnp.max(s, axis=1)


def _ref_forward(params, added_code, removed_code):
    emb = params["embed"]

    def code(x):
        B, H, L, T, D = x.shape
        x = x.reshape(B * H * L, T, D)
        x = jnp.concatenate([_ref_conv_branch(x, w, b) for (w, b) in params["convs_line"]], 1)
        x = x.reshape(B, L, -1)
        x = jnp.concatenate([_ref_conv_branch(x, w, b) for (w, b) in params["convs_multi"]], 1)
        return x

    d = code(emb[added_code]) - code(emb[removed_code])
    h = jnp.maximum(d @ params["w1"] + params["b1"], 0.0)
    o = h @ params["w2"] + params["b2"]
    return (1.0 / (1.0 + jnp.exp(-o))).squeeze(1)


# ---------------- params ----------------

def init_params(key):
    ks = jax.random.split(key, 16)

    def rnd(k, shape, scale=0.1):
        return (scale * jax.random.normal(k, shape)).astype(jnp.float32)

    convs_line = []
    convs_multi = []
    for i, K in enumerate(FILTER_SIZES):
        convs_line.append((rnd(ks[i], (K, EMBED_DIM, NUM_FILTERS)),
                           rnd(ks[i + 2], (1, NUM_FILTERS))))
        convs_multi.append((rnd(ks[i + 4], (K, FEAT_DIM, NUM_FILTERS)),
                            rnd(ks[i + 6], (1, NUM_FILTERS))))
    return {
        "embed": rnd(ks[8], (VOCAB_CODE, EMBED_DIM), 1.0),
        "convs_line": convs_line,
        "convs_multi": convs_multi,
        "w1": rnd(ks[9], (FEAT_DIM, HIDDEN_UNITS)),
        "b1": rnd(ks[10], (1, HIDDEN_UNITS)),
        "w2": rnd(ks[11], (HIDDEN_UNITS, CLASS_NUM)),
        "b2": rnd(ks[12], (1, CLASS_NUM)),
    }


if __name__ == "__main__":
    key = jax.random.PRNGKey(0)
    k_params, k_data = jax.random.split(key)
    params = init_params(k_params)

    # added_code / removed_code: int token ids, shape (batch, n_hunk, n_line, n_token)
    B, H, L, T = 2, 1, 4, 6   # n_hunk must be 1 (the torch reshape assumes it)
    k1, k2 = jax.random.split(k_data)
    added_code = jax.random.randint(k1, (B, H, L, T), 0, VOCAB_CODE, dtype=jnp.int32)
    removed_code = jax.random.randint(k2, (B, H, L, T), 0, VOCAB_CODE, dtype=jnp.int32)

    out = patch_embedding_forward(params, added_code, removed_code)
    out = jax.block_until_ready(out)

    ref = _ref_forward(params, added_code, removed_code)
    np.testing.assert_allclose(np.asarray(out), np.asarray(ref), rtol=1e-3, atol=1e-3)
    assert out.shape == (B,)

    print("KERNEL_OK")
</pallas_src>

<mosaic_0001>
module attributes {stable_mosaic.version = 11 : i64} {
  func.func @kernel(%arg0: i32, %arg1: memref<2x8x6xi32, #tpu.memory_space<vmem>>, %arg2: memref<128x32xf32, #tpu.memory_space<vmem>>, %arg3: memref<2x1xf32, #tpu.memory_space<vmem>>) attributes {dimension_semantics = [#tpu.dimension_semantics<parallel>], iteration_bounds = array<i64: 1>, scalar_prefetch = 0 : i64, scratch_operands = 0 : i64, tpu.core_type = #tpu.core_type<tc>, window_params = [{transform_indices = @transform_0, window_bounds = array<i64: 2, 8, 6>}, {pipeline_mode = #tpu.pipeline_mode<synchronous>, transform_indices = @transform_1, window_bounds = array<i64: 128, 32>}, {transform_indices = @transform_2, window_bounds = array<i64: 2, 1>}]} {
    %c0 = arith.constant 0 : index
    %c0_0 = arith.constant 0 : index
    %0 = vector.load %arg2[%c0, %c0_0] : memref<128x32xf32, #tpu.memory_space<vmem>>, vector<50x24xf32>
    %c56 = arith.constant 56 : index
    %c0_1 = arith.constant 0 : index
    %1 = vector.load %arg2[%c56, %c0_1] : memref<128x32xf32, #tpu.memory_space<vmem>>, vector<16x24xf32>
    %c72 = arith.constant 72 : index
    %c0_2 = arith.constant 0 : index
    %2 = vector.load %arg2[%c72, %c0_2] : memref<128x32xf32, #tpu.memory_space<vmem>>, vector<16x32xf32>
    %c88 = arith.constant 88 : index
    %c0_3 = arith.constant 0 : index
    %3 = vector.load %arg2[%c88, %c0_3] : memref<128x32xf32, #tpu.memory_space<vmem>>, vector<32x1xf32>
    %c120 = arith.constant 120 : index
    %c0_4 = arith.constant 0 : index
    %4 = vector.load %arg2[%c120, %c0_4] : memref<128x32xf32, #tpu.memory_space<vmem>>, vector<1x16xf32>
    %c121 = arith.constant 121 : index
    %c0_5 = arith.constant 0 : index
    %5 = vector.load %arg2[%c121, %c0_5] : memref<128x32xf32, #tpu.memory_space<vmem>>, vector<1x16xf32>
    %c122 = arith.constant 122 : index
    %c0_6 = arith.constant 0 : index
    %6 = vector.load %arg2[%c122, %c0_6] : memref<128x32xf32, #tpu.memory_space<vmem>>, vector<1x32xf32>
    %c123 = arith.constant 123 : index
    %c0_7 = arith.constant 0 : index
    %7 = vector.load %arg2[%c123, %c0_7] : memref<128x32xf32, #tpu.memory_space<vmem>>, vector<1x1xf32>
    %c0_8 = arith.constant 0 : index
    %c0_9 = arith.constant 0 : index
    %c0_10 = arith.constant 0 : index
    %8 = vector.load %arg1[%c0_8, %c0_9, %c0_10] : memref<2x8x6xi32, #tpu.memory_space<vmem>>, vector<2x8x6xi32>
    %9 = tpu.iota {dimensions = array<i32: 2>} : vector<2x8x50xi32>
    %10 = vector.extract_strided_slice %8 {offsets = [0, 0, 0], sizes = [2, 8, 1], strides = [1, 1, 1]} : vector<2x8x6xi32> to vector<2x8x1xi32>
    %11 = vector.broadcast %10 : vector<2x8x1xi32> to vector<2x8x50xi32>
    %12 = arith.cmpi eq, %9, %11 : vector<2x8x50xi32>
    %13 = arith.extui %12 : vector<2x8x50xi1> to vector<2x8x50xi32>
    %14 = arith.sitofp %13 : vector<2x8x50xi32> to vector<2x8x50xf32>
    %15 = vector.shape_cast %14 : vector<2x8x50xf32> to vector<16x50xf32>
    %cst = arith.constant dense<0.000000e+00> : vector<16x24xf32>
    %16 = tpu.matmul %15, %0, %cst {dimension_numbers = #tpu.dot_dimension_numbers<[1], [0], [0], [1], [0, 0, 1, 1], [], []>} : vector<16x50xf32>, vector<50x24xf32>, vector<16x24xf32> -> vector<16x24xf32>
    %17 = vector.extract_strided_slice %8 {offsets = [0, 0, 1], sizes = [2, 8, 1], strides = [1, 1, 1]} : vector<2x8x6xi32> to vector<2x8x1xi32>
    %18 = vector.broadcast %17 : vector<2x8x1xi32> to vector<2x8x50xi32>
    %19 = arith.cmpi eq, %9, %18 : vector<2x8x50xi32>
    %20 = arith.extui %19 : vector<2x8x50xi1> to vector<2x8x50xi32>
    %21 = arith.sitofp %20 : vector<2x8x50xi32> to vector<2x8x50xf32>
    %22 = vector.shape_cast %21 : vector<2x8x50xf32> to vector<16x50xf32>
    %cst_11 = arith.constant dense<0.000000e+00> : vector<16x24xf32>
    %23 = tpu.matmul %22, %0, %cst_11 {dimension_numbers = #tpu.dot_dimension_numbers<[1], [0], [0], [1], [0, 0, 1, 1], [], []>} : vector<16x50xf32>, vector<50x24xf32>, vector<16x24xf32> -> vector<16x24xf32>
    %24 = vector.extract_strided_slice %8 {offsets = [0, 0, 2], sizes = [2, 8, 1], strides = [1, 1, 1]} : vector<2x8x6xi32> to vector<2x8x1xi32>
    %25 = vector.broadcast %24 : vector<2x8x1xi32> to vector<2x8x50xi32>
    %26 = arith.cmpi eq, %9, %25 : vector<2x8x50xi32>
    %27 = arith.extui %26 : vector<2x8x50xi1> to vector<2x8x50xi32>
    %28 = arith.sitofp %27 : vector<2x8x50xi32> to vector<2x8x50xf32>
    %29 = vector.shape_cast %28 : vector<2x8x50xf32> to vector<16x50xf32>
    %cst_12 = arith.constant dense<0.000000e+00> : vector<16x24xf32>
    %30 = tpu.matmul %29, %0, %cst_12 {dimension_numbers = #tpu.dot_dimension_numbers<[1], [0], [0], [1], [0, 0, 1, 1], [], []>} : vector<16x50xf32>, vector<50x24xf32>, vector<16x24xf32> -> vector<16x24xf32>
    %31 = vector.extract_strided_slice %8 {offsets = [0, 0, 3], sizes = [2, 8, 1], strides = [1, 1, 1]} : vector<2x8x6xi32> to vector<2x8x1xi32>
    %32 = vector.broadcast %31 : vector<2x8x1xi32> to vector<2x8x50xi32>
    %33 = arith.cmpi eq, %9, %32 : vector<2x8x50xi32>
    %34 = arith.extui %33 : vector<2x8x50xi1> to vector<2x8x50xi32>
    %35 = arith.sitofp %34 : vector<2x8x50xi32> to vector<2x8x50xf32>
    %36 = vector.shape_cast %35 : vector<2x8x50xf32> to vector<16x50xf32>
    %cst_13 = arith.constant dense<0.000000e+00> : vector<16x24xf32>
    %37 = tpu.matmul %36, %0, %cst_13 {dimension_numbers = #tpu.dot_dimension_numbers<[1], [0], [0], [1], [0, 0, 1, 1], [], []>} : vector<16x50xf32>, vector<50x24xf32>, vector<16x24xf32> -> vector<16x24xf32>
    %38 = vector.extract_strided_slice %8 {offsets = [0, 0, 4], sizes = [2, 8, 1], strides = [1, 1, 1]} : vector<2x8x6xi32> to vector<2x8x1xi32>
    %39 = vector.broadcast %38 : vector<2x8x1xi32> to vector<2x8x50xi32>
    %40 = arith.cmpi eq, %9, %39 : vector<2x8x50xi32>
    %41 = arith.extui %40 : vector<2x8x50xi1> to vector<2x8x50xi32>
    %42 = arith.sitofp %41 : vector<2x8x50xi32> to vector<2x8x50xf32>
    %43 = vector.shape_cast %42 : vector<2x8x50xf32> to vector<16x50xf32>
    %cst_14 = arith.constant dense<0.000000e+00> : vector<16x24xf32>
    %44 = tpu.matmul %43, %0, %cst_14 {dimension_numbers = #tpu.dot_dimension_numbers<[1], [0], [0], [1], [0, 0, 1, 1], [], []>} : vector<16x50xf32>, vector<50x24xf32>, vector<16x24xf32> -> vector<16x24xf32>
    %45 = vector.extract_strided_slice %8 {offsets = [0, 0, 5], sizes = [2, 8, 1], strides = [1, 1, 1]} : vector<2x8x6xi32> to vector<2x8x1xi32>
    %46 = vector.broadcast %45 : vector<2x8x1xi32> to vector<2x8x50xi32>
    %47 = arith.cmpi eq, %9, %46 : vector<2x8x50xi32>
    %48 = arith.extui %47 : vector<2x8x50xi1> to vector<2x8x50xi32>
    %49 = arith.sitofp %48 : vector<2x8x50xi32> to vector<2x8x50xf32>
    %50 = vector.shape_cast %49 : vector<2x8x50xf32> to vector<16x50xf32>
    %cst_15 = arith.constant dense<0.000000e+00> : vector<16x24xf32>
    %51 = tpu.matmul %50, %0, %cst_15 {dimension_numbers = #tpu.dot_dimension_numbers<[1], [0], [0], [1], [0, 0, 1, 1], [], []>} : vector<16x50xf32>, vector<50x24xf32>, vector<16x24xf32> -> vector<16x24xf32>
    %52 = vector.extract_strided_slice %16 {offsets = [0, 0], sizes = [16, 8], strides = [1, 1]} : vector<16x24xf32> to vector<16x8xf32>
    %53 = vector.extract_strided_slice %23 {offsets = [0, 0], sizes = [16, 8], strides = [1, 1]} : vector<16x24xf32> to vector<16x8xf32>
    %54 = arith.maximumf %52, %53 : vector<16x8xf32>
    %55 = vector.extract_strided_slice %30 {offsets = [0, 0], sizes = [16, 8], strides = [1, 1]} : vector<16x24xf32> to vector<16x8xf32>
    %56 = arith.maximumf %54, %55 : vector<16x8xf32>
    %57 = vector.extract_strided_slice %37 {offsets = [0, 0], sizes = [16, 8], strides = [1, 1]} : vector<16x24xf32> to vector<16x8xf32>
    %58 = arith.maximumf %56, %57 : vector<16x8xf32>
    %59 = vector.extract_strided_slice %44 {offsets = [0, 0], sizes = [16, 8], strides = [1, 1]} : vector<16x24xf32> to vector<16x8xf32>
    %60 = arith.maximumf %58, %59 : vector<16x8xf32>
    %61 = vector.extract_strided_slice %51 {offsets = [0, 0], sizes = [16, 8], strides = [1, 1]} : vector<16x24xf32> to vector<16x8xf32>
    %62 = arith.maximumf %60, %61 : vector<16x8xf32>
    %63 = vector.extract_strided_slice %4 {offsets = [0, 0], sizes = [1, 8], strides = [1, 1]} : vector<1x16xf32> to vector<1x8xf32>
    %64 = vector.broadcast %63 : vector<1x8xf32> to vector<16x8xf32>
    %65 = arith.addf %62, %64 : vector<16x8xf32>
    %cst_16 = arith.constant 0.000000e+00 : f32
    %66 = vector.broadcast %cst_16 : f32 to vector<16x8xf32>
    %67 = arith.maximumf %65, %66 : vector<16x8xf32>
    %68 = vector.extract_strided_slice %16 {offsets = [0, 8], sizes = [16, 8], strides = [1, 1]} : vector<16x24xf32> to vector<16x8xf32>
    %69 = vector.extract_strided_slice %23 {offsets = [0, 16], sizes = [16, 8], strides = [1, 1]} : vector<16x24xf32> to vector<16x8xf32>
    %70 = arith.addf %68, %69 : vector<16x8xf32>
    %71 = vector.extract_strided_slice %23 {offsets = [0, 8], sizes = [16, 8], strides = [1, 1]} : vector<16x24xf32> to vector<16x8xf32>
    %72 = vector.extract_strided_slice %30 {offsets = [0, 16], sizes = [16, 8], strides = [1, 1]} : vector<16x24xf32> to vector<16x8xf32>
    %73 = arith.addf %71, %72 : vector<16x8xf32>
    %74 = arith.maximumf %70, %73 : vector<16x8xf32>
    %75 = vector.extract_strided_slice %30 {offsets = [0, 8], sizes = [16, 8], strides = [1, 1]} : vector<16x24xf32> to vector<16x8xf32>
    %76 = vector.extract_strided_slice %37 {offsets = [0, 16], sizes = [16, 8], strides = [1, 1]} : vector<16x24xf32> to vector<16x8xf32>
    %77 = arith.addf %75, %76 : vector<16x8xf32>
    %78 = arith.maximumf %74, %77 : vector<16x8xf32>
    %79 = vector.extract_strided_slice %37 {offsets = [0, 8], sizes = [16, 8], strides = [1, 1]} : vector<16x24xf32> to vector<16x8xf32>
    %80 = vector.extract_strided_slice %44 {offsets = [0, 16], sizes = [16, 8], strides = [1, 1]} : vector<16x24xf32> to vector<16x8xf32>
    %81 = arith.addf %79, %80 : vector<16x8xf32>
    %82 = arith.maximumf %78, %81 : vector<16x8xf32>
    %83 = vector.extract_strided_slice %44 {offsets = [0, 8], sizes = [16, 8], strides = [1, 1]} : vector<16x24xf32> to vector<16x8xf32>
    %84 = vector.extract_strided_slice %51 {offsets = [0, 16], sizes = [16, 8], strides = [1, 1]} : vector<16x24xf32> to vector<16x8xf32>
    %85 = arith.addf %83, %84 : vector<16x8xf32>
    %86 = arith.maximumf %82, %85 : vector<16x8xf32>
    %87 = vector.extract_strided_slice %4 {offsets = [0, 8], sizes = [1, 8], strides = [1, 1]} : vector<1x16xf32> to vector<1x8xf32>
    %88 = vector.broadcast %87 : vector<1x8xf32> to vector<16x8xf32>
    %89 = arith.addf %86, %88 : vector<16x8xf32>
    %cst_17 = arith.constant 0.000000e+00 : f32
    %90 = vector.broadcast %cst_17 : f32 to vector<16x8xf32>
    %91 = arith.maximumf %89, %90 : vector<16x8xf32>
    %92 = vector.extract_strided_slice %1 {offsets = [0, 0], sizes = [8, 24], strides = [1, 1]} : vector<16x24xf32> to vector<8x24xf32>
    %cst_18 = arith.constant dense<0.000000e+00> : vector<16x24xf32>
    %93 = tpu.matmul %67, %92, %cst_18 {dimension_numbers = #tpu.dot_dimension_numbers<[1], [0], [0], [1], [0, 0, 1, 1], [], []>} : vector<16x8xf32>, vector<8x24xf32>, vector<16x24xf32> -> vector<16x24xf32>
    %94 = vector.extract_strided_slice %1 {offsets = [8, 0], sizes = [8, 24], strides = [1, 1]} : vector<16x24xf32> to vector<8x24xf32>
    %cst_19 = arith.constant dense<0.000000e+00> : vector<16x24xf32>
    %95 = tpu.matmul %91, %94, %cst_19 {dimension_numbers = #tpu.dot_dimension_numbers<[1], [0], [0], [1], [0, 0, 1, 1], [], []>} : vector<16x8xf32>, vector<8x24xf32>, vector<16x24xf32> -> vector<16x24xf32>
    %96 = arith.addf %93, %95 : vector<16x24xf32>
    %97 = vector.shape_cast %96 : vector<16x24xf32> to vector<4x4x24xf32>
    %98 = vector.extract_strided_slice %97 {offsets = [0, 0, 0], sizes = [4, 4, 8], strides = [1, 1, 1]} : vector<4x4x24xf32> to vector<4x4x8xf32>
    %cst_20 = arith.constant dense<0xFF800000> : vector<4x8xf32>
    %99 = vector.multi_reduction <maximumf>, %98, %cst_20 [1] : vector<4x4x8xf32> to vector<4x8xf32>
    %100 = vector.extract_strided_slice %5 {offsets = [0, 0], sizes = [1, 8], strides = [1, 1]} : vector<1x16xf32> to vector<1x8xf32>
    %101 = vector.broadcast %100 : vector<1x8xf32> to vector<4x8xf32>
    %102 = arith.addf %99, %101 : vector<4x8xf32>
    %cst_21 = arith.constant 0.000000e+00 : f32
    %103 = vector.broadcast %cst_21 : f32 to vector<4x8xf32>
    %104 = arith.maximumf %102, %103 : vector<4x8xf32>
    %105 = vector.shape_cast %104 : vector<4x8xf32> to vector<2x2x8xf32>
    %106 = vector.extract_strided_slice %105 {offsets = [0, 0, 0], sizes = [2, 1, 8], strides = [1, 1, 1]} : vector<2x2x8xf32> to vector<2x1x8xf32>
    %107 = vector.shape_cast %106 : vector<2x1x8xf32> to vector<2x8xf32>
    %108 = vector.extract_strided_slice %105 {offsets = [0, 1, 0], sizes = [2, 1, 8], strides = [1, 1, 1]} : vector<2x2x8xf32> to vector<2x1x8xf32>
    %109 = vector.shape_cast %108 : vector<2x1x8xf32> to vector<2x8xf32>
    %110 = arith.subf %107, %109 : vector<2x8xf32>
    %111 = vector.extract_strided_slice %97 {offsets = [0, 0, 8], sizes = [4, 3, 8], strides = [1, 1, 1]} : vector<4x4x24xf32> to vector<4x3x8xf32>
    %112 = vector.extract_strided_slice %97 {offsets = [0, 1, 16], sizes = [4, 3, 8], strides = [1, 1, 1]} : vector<4x4x24xf32> to vector<4x3x8xf32>
    %113 = arith.addf %111, %112 : vector<4x3x8xf32>
    %cst_22 = arith.constant dense<0xFF800000> : vector<4x8xf32>
    %114 = vector.multi_reduction <maximumf>, %113, %cst_22 [1] : vector<4x3x8xf32> to vector<4x8xf32>
    %115 = vector.extract_strided_slice %5 {offsets = [0, 8], sizes = [1, 8], strides = [1, 1]} : vector<1x16xf32> to vector<1x8xf32>
    %116 = vector.broadcast %115 : vector<1x8xf32> to vector<4x8xf32>
    %117 = arith.addf %114, %116 : vector<4x8xf32>
    %cst_23 = arith.constant 0.000000e+00 : f32
    %118 = vector.broadcast %cst_23 : f32 to vector<4x8xf32>
    %119 = arith.maximumf %117, %118 : vector<4x8xf32>
    %120 = vector.shape_cast %119 : vector<4x8xf32> to vector<2x2x8xf32>
    %121 = vector.extract_strided_slice %120 {offsets = [0, 0, 0], sizes = [2, 1, 8], strides = [1, 1, 1]} : vector<2x2x8xf32> to vector<2x1x8xf32>
    %122 = vector.shape_cast %121 : vector<2x1x8xf32> to vector<2x8xf32>
    %123 = vector.extract_strided_slice %120 {offsets = [0, 1, 0], sizes = [2, 1, 8], strides = [1, 1, 1]} : vector<2x2x8xf32> to vector<2x1x8xf32>
    %124 = vector.shape_cast %123 : vector<2x1x8xf32> to vector<2x8xf32>
    %125 = arith.subf %122, %124 : vector<2x8xf32>
    %126 = vector.extract_strided_slice %2 {offsets = [0, 0], sizes = [8, 32], strides = [1, 1]} : vector<16x32xf32> to vector<8x32xf32>
    %cst_24 = arith.constant dense<0.000000e+00> : vector<2x32xf32>
    %127 = tpu.matmul %110, %126, %cst_24 {dimension_numbers = #tpu.dot_dimension_numbers<[1], [0], [0], [1], [0, 0, 1, 1], [], []>} : vector<2x8xf32>, vector<8x32xf32>, vector<2x32xf32> -> vector<2x32xf32>
    %128 = vector.extract_strided_slice %2 {offsets = [8, 0], sizes = [8, 32], strides = [1, 1]} : vector<16x32xf32> to vector<8x32xf32>
    %cst_25 = arith.constant dense<0.000000e+00> : vector<2x32xf32>
    %129 = tpu.matmul %125, %128, %cst_25 {dimension_numbers = #tpu.dot_dimension_numbers<[1], [0], [0], [1], [0, 0, 1, 1], [], []>} : vector<2x8xf32>, vector<8x32xf32>, vector<2x32xf32> -> vector<2x32xf32>
    %130 = arith.addf %127, %129 : vector<2x32xf32>
    %131 = vector.broadcast %6 : vector<1x32xf32> to vector<2x32xf32>
    %132 = arith.addf %130, %131 : vector<2x32xf32>
    %cst_26 = arith.constant 0.000000e+00 : f32
    %133 = vector.broadcast %cst_26 : f32 to vector<2x32xf32>
    %134 = arith.maximumf %132, %133 : vector<2x32xf32>
    %cst_27 = arith.constant dense<0.000000e+00> : vector<2x1xf32>
    %135 = tpu.matmul %134, %3, %cst_27 {dimension_numbers = #tpu.dot_dimension_numbers<[1], [0], [0], [1], [0, 0, 1, 1], [], []>} : vector<2x32xf32>, vector<32x1xf32>, vector<2x1xf32> -> vector<2x1xf32>
    %136 = vector.broadcast %7 : vector<1x1xf32> to vector<2x1xf32>
    %137 = arith.addf %135, %136 : vector<2x1xf32>
    %cst_28 = arith.constant 0.000000e+00 : f32
    %138 = vector.broadcast %cst_28 : f32 to vector<2x1xf32>
    %139 = arith.subf %138, %137 : vector<2x1xf32>
    %140 = math.exp %139 : vector<2x1xf32>
    %cst_29 = arith.constant 1.000000e+00 : f32
    %141 = vector.broadcast %cst_29 : f32 to vector<2x1xf32>
    %142 = arith.addf %141, %140 : vector<2x1xf32>
    %cst_30 = arith.constant 1.000000e+00 : f32
    %143 = vector.broadcast %cst_30 : f32 to vector<2x1xf32>
    %144 = arith.divf %143, %142 : vector<2x1xf32>
    %c0_31 = arith.constant 0 : index
    %c0_32 = arith.constant 0 : index
    %145 = vector.load %arg3[%c0_31, %c0_32] : memref<2x1xf32, #tpu.memory_space<vmem>>, vector<2x1xf32>
    tpu.vector_store %arg3[%c0_31, %c0_32], %144 {strides = array<i32>} : memref<2x1xf32, #tpu.memory_space<vmem>>, vector<2x1xf32>,
    return
  }
  func.func @transform_0(%arg0: i32) -> (i32, i32, i32) {
    %c0_i32 = arith.constant 0 : i32
    %c0_i32_0 = arith.constant 0 : i32
    %c0_i32_1 = arith.constant 0 : i32
    return %arg0, %c0_i32, %c0_i32_0 : i32, i32, i32
  }
  func.func @transform_1(%arg0: i32) -> (i32, i32) {
    %c0_i32 = arith.constant 0 : i32
    %c0_i32_0 = arith.constant 0 : i32
    %c0_i32_1 = arith.constant 0 : i32
    return %c0_i32, %c0_i32_0 : i32, i32
  }
  func.func @transform_2(%arg0: i32) -> (i32, i32) {
    %c0_i32 = arith.constant 0 : i32
    %c0_i32_0 = arith.constant 0 : i32
    return %arg0, %c0_i32 : i32, i32
  }
}

</mosaic_0001>

<llo_original>
// kernel: tpu_custom_call.1
$region0: #{tpu_custom_call.1}
  #allocation0 [shape = 'u32[]', space=smem, size = 0x4, offset = 0x4, fixed_abs, tag = 'smem constant byte address 0x4 - core index']
  #allocation1 [shape = 'u32[144,128]{1,0:T(1,128)}', space=vmem, size = 0x12000, scoped, tag = 'internal scratch']
  %s0 = inlined_call_operand.vmem [shape: s32[2,8,6], index: 0, kind: input, shape index: {}]
  %s1 = inlined_call_operand.vmem [shape: f32[128,32], index: 1, kind: input, shape index: {}]
  %s2 = inlined_call_operand.vmem [shape: f32[2,1], index: 2, kind: output, shape index: {}]
  %s3 = sld [smem:[#allocation0]]
  $region18: #{tpu_custom_call.1} parent=0
    _
  %s5 = ssub.s32 1, %s3
  %s6 = scalar_select 0, %s5, %s3
  // Predicated region
  $region2: #{tpu_custom_call.1} parent=0 // pred_check
    _
  $region3: #{tpu_custom_call.1} parent=0 // pred_check_branch
    %8 = sbr.rel (0) target = $region5
  $region4: #{tpu_custom_call.1} parent=0 // pred_region
    _
  $region5: #{tpu_custom_call.1} parent=0 // pred_fallthru
    _
  // Predicated region
  $region6: #{tpu_custom_call.1} parent=0 // pred_check
    _
  $region7: #{tpu_custom_call.1} parent=0 // pred_check_branch
    %10 = sbr.rel (0) target = $region9
  $region8: #{tpu_custom_call.1} parent=0 // pred_region
    _
  $region9: #{tpu_custom_call.1} parent=0 // pred_fallthru
    _
  %v11 = vld [vmem:[%s1] sm:$0xff]
  %v12 = vld [vmem:[%s1 + $0x8] sm:$0xff]
  %v13 = vld [vmem:[%s1 + $0x10] sm:$0xff]
  %v14 = vld [vmem:[%s1 + $0x18] sm:$0xff]
  %v15 = vld [vmem:[%s1 + $0x20] sm:$0xff]
  %v16 = vld [vmem:[%s1 + $0x28] sm:$0xff]
  %v17 = vld [vmem:[%s1 + $0x30] sm:$0x3]
  %v18 = vld [vmem:[%s1 + $0x38] sm:$0xff]
  %v19 = vld [vmem:[%s1 + $0x40] sm:$0xff]
  %v20 = vld [vmem:[%s1 + $0x48] sm:$0xff]
  %v21 = vld [vmem:[%s1 + $0x50] sm:$0xff]
  %v22 = vld [vmem:[%s1 + $0x58] sm:$0xff]
  %v23 = vld [vmem:[%s1 + $0x60] sm:$0xff]
  %v24 = vld [vmem:[%s1 + $0x68] sm:$0xff]
  %v25 = vld [vmem:[%s1 + $0x70] sm:$0xff]
  %v26 = vld [vmem:[%s1 + $0x78] sm:$0x1]
  %v27 = vld [vmem:[%s1 + $0x79] sm:$0x1]
  %v28 = vld [vmem:[%s1 + $0x7a] sm:$0x1]
  %v29 = vld [vmem:[%s1 + $0x7b] sm:$0x1]
  %v30 = vld [vmem:[%s0] sm:$0xff]
  %v31 = vld [vmem:[%s0 + $0x8] sm:$0xff]
  %v32 = vlaneseq
  %v33 = vand.u32 %v32, 127
  %34 = vset.pattern.permute.xlu0 0
  %35 = vperm.xlu0 %34, %v30
  %v36 = vpop.permute.xlu0 %35
  %37 = vset.pattern.permute.xlu0 0
  %38 = vperm.xlu0 %37, %v31
  %v39 = vpop.permute.xlu0 %38
  %vm40 = vcmp.eq.s32.totalorder %v33, %v36
  %vm41 = vcmp.eq.s32.totalorder %v33, %v39
  %v42 = vsel %vm40, 1, 0
  %v43 = vsel %vm41, 1, 0
  %v44 = vcvt.s32.f32 %v42
  %v45 = vcvt.s32.f32 %v43
  %vm46 = vcmask 408576
  %v48 = vsel %vm46, %v44, 0
  %v51 = vsel %vm46, %v45, 0
  %vm53 = vcmask 1041408
  %v55 = vsel %vm53, %v17, 0
  %57 = vmatprep.subr.mxu0 0.0
  %58 = vmatpush1.msra.mxu0 %v11
  %59 = vmatprep.subr.mxu0 0.0
  %60 = vmatpush1.msra.mxu0 %v12
  %61 = vmatprep.subr.mxu0 0.0
  %62 = vmatpush1.msra.mxu0 %v13
  %63 = vmatprep.subr.mxu0 0.0
  %64 = vmatpush1.msra.mxu0 %v14
  %65 = vmatprep.subr.mxu0 0.0
  %66 = vmatpush1.msra.mxu0 %v15
  %67 = vmatprep.subr.mxu0 0.0
  %68 = vmatpush1.msra.mxu0 %v16
  %69 = vmatprep.subr.mxu0 0.0
  %70 = vmatpush1.msra.mxu0 %v55
  %71 = vmatprep.subr.mxu0 0.0
  %72 = vmatpush1.msra.mxu0 0.0
  %73 = vmatprep.subr.mxu0 0.0
  %74 = vmatpush1.msra.mxu0 0.0
  %75 = vmatprep.subr.mxu0 0.0
  %76 = vmatpush1.msra.mxu0 0.0
  %77 = vmatprep.subr.mxu0 0.0
  %78 = vmatpush1.msra.mxu0 0.0
  %79 = vmatprep.subr.mxu0 0.0
  %80 = vmatpush1.msra.mxu0 0.0
  %81 = vmatprep.subr.mxu0 0.0
  %82 = vmatpush1.msra.mxu0 0.0
  %83 = vmatprep.subr.mxu0 0.0
  %84 = vmatpush1.msra.mxu0 0.0
  %85 = vmatprep.subr.mxu0 0.0
  %86 = vmatpush1.msra.mxu0 0.0
  %87 = vmatprep.subr.mxu0 0.0
  %88 = vmatpush1.msra.mxu0 0.0
  %89 = vmatprep.subr.mxu0 0.0
  %90 = vmatpush1.msra.mxu0 0.0
  %91 = vmatprep.subr.mxu0 0.0
  %92 = vmatpush1.msra.mxu0 0.0
  %93 = vmatprep.subr.mxu0 0.0
  %94 = vmatpush1.msra.mxu0 0.0
  %95 = vmatprep.subr.mxu0 0.0
  %96 = vmatpush1.msra.mxu0 0.0
  %97 = vmatprep.subr.mxu0 0.0
  %98 = vmatpush1.msra.mxu0 0.0
  %99 = vmatprep.subr.mxu0 0.0
  %100 = vmatpush1.msra.mxu0 0.0
  %101 = vmatprep.subr.mxu0 0.0
  %102 = vmatpush1.msra.mxu0 0.0
  %103 = vmatprep.subr.mxu0 0.0
  %104 = vmatpush1.msra.mxu0 0.0
  %105 = vmatprep.subr.mxu0 0.0
  %106 = vmatpush1.msra.mxu0 0.0
  %107 = vmatprep.subr.mxu0 0.0
  %108 = vmatpush1.msra.mxu0 0.0
  %109 = vmatprep.subr.mxu0 0.0
  %110 = vmatpush1.msra.mxu0 0.0
  %111 = vmatprep.subr.mxu0 0.0
  %112 = vmatpush1.msra.mxu0 0.0
  %113 = vmatprep.subr.mxu0 0.0
  %114 = vmatpush1.msra.mxu0 0.0
  %115 = vmatprep.subr.mxu0 0.0
  %116 = vmatpush1.msra.mxu0 0.0
  %117 = vmatprep.subr.mxu0 0.0
  %118 = vmatpush1.msra.mxu0 0.0
  %119 = vmatprep.subr.mxu0 0.0
  %120 = vmatpush1.msra.mxu0 0.0
  %121 = vmatprep.mubr.f32.mxu0 0.0
  %122 = vmatmul.mubr.f32.gmra.mrb[0].mxu0 %v48
  %v123 = vpop.f32.mrb[0].mxu0
  %v124 = vadd.f32 0.0, %v123
  %v125 = vpop.f32.mrb[0].mxu0
  %126 = vmatprep.mubr.f32.mxu0 0.0
  %127 = vmatmul.mubr.f32.gmra.mrb[0].mxu0 %v51
  %v128 = vpop.f32.mrb[0].mxu0
  %v129 = vadd.f32 0.0, %v128
  %v130 = vpop.f32.mrb[0].mxu0
  %131 = vdwg.mxu0
  %132 = vset.pattern.permute.xlu0 1
  %133 = vperm.xlu0 %132, %v30
  %v134 = vpop.permute.xlu0 %133
  %135 = vset.pattern.permute.xlu0 1
  %136 = vperm.xlu0 %135, %v31
  %v137 = vpop.permute.xlu0 %136
  %vm138 = vcmp.eq.s32.totalorder %v33, %v134
  %vm139 = vcmp.eq.s32.totalorder %v33, %v137
  %v140 = vsel %vm138, 1, 0
  %v141 = vsel %vm139, 1, 0
  %v142 = vcvt.s32.f32 %v140
  %v143 = vcvt.s32.f32 %v141
  %v145 = vsel %vm46, %v142, 0
  %v148 = vsel %vm46, %v143, 0
  %150 = vmatprep.subr.mxu0 0.0
  %151 = vmatpush1.msra.mxu0 %v11
  %152 = vmatprep.subr.mxu0 0.0
  %153 = vmatpush1.msra.mxu0 %v12
  %154 = vmatprep.subr.mxu0 0.0
  %155 = vmatpush1.msra.mxu0 %v13
  %156 = vmatprep.subr.mxu0 0.0
  %157 = vmatpush1.msra.mxu0 %v14
  %158 = vmatprep.subr.mxu0 0.0
  %159 = vmatpush1.msra.mxu0 %v15
  %160 = vmatprep.subr.mxu0 0.0
  %161 = vmatpush1.msra.mxu0 %v16
  %162 = vmatprep.subr.mxu0 0.0
  %163 = vmatpush1.msra.mxu0 %v55
  %164 = vmatprep.subr.mxu0 0.0
  %165 = vmatpush1.msra.mxu0 0.0
  %166 = vmatprep.subr.mxu0 0.0
  %167 = vmatpush1.msra.mxu0 0.0
  %168 = vmatprep.subr.mxu0 0.0
  %169 = vmatpush1.msra.mxu0 0.0
  %170 = vmatprep.subr.mxu0 0.0
  %171 = vmatpush1.msra.mxu0 0.0
  %172 = vmatprep.subr.mxu0 0.0
  %173 = vmatpush1.msra.mxu0 0.0
  %174 = vmatprep.subr.mxu0 0.0
  %175 = vmatpush1.msra.mxu0 0.0
  %176 = vmatprep.subr.mxu0 0.0
  %177 = vmatpush1.msra.mxu0 0.0
  %178 = vmatprep.subr.mxu0 0.0
  %179 = vmatpush1.msra.mxu0 0.0
  %180 = vmatprep.subr.mxu0 0.0
  %181 = vmatpush1.msra.mxu0 0.0
  %182 = vmatprep.subr.mxu0 0.0
  %183 = vmatpush1.msra.mxu0 0.0
  %184 = vmatprep.subr.mxu0 0.0
  %185 = vmatpush1.msra.mxu0 0.0
  %186 = vmatprep.subr.mxu0 0.0
  %187 = vmatpush1.msra.mxu0 0.0
  %188 = vmatprep.subr.mxu0 0.0
  %189 = vmatpush1.msra.mxu0 0.0
  %190 = vmatprep.subr.mxu0 0.0
  %191 = vmatpush1.msra.mxu0 0.0
  %192 = vmatprep.subr.mxu0 0.0
  %193 = vmatpush1.msra.mxu0 0.0
  %194 = vmatprep.subr.mxu0 0.0
  %195 = vmatpush1.msra.mxu0 0.0
  %196 = vmatprep.subr.mxu0 0.0
  %197 = vmatpush1.msra.mxu0 0.0
  %198 = vmatprep.subr.mxu0 0.0
  %199 = vmatpush1.msra.mxu0 0.0
  %200 = vmatprep.subr.mxu0 0.0
  %201 = vmatpush1.msra.mxu0 0.0
  %202 = vmatprep.subr.mxu0 0.0
  %203 = vmatpush1.msra.mxu0 0.0
  %204 = vmatprep.subr.mxu0 0.0
  %205 = vmatpush1.msra.mxu0 0.0
  %206 = vmatprep.subr.mxu0 0.0
  %207 = vmatpush1.msra.mxu0 0.0
  %208 = vmatprep.subr.mxu0 0.0
  %209 = vmatpush1.msra.mxu0 0.0
  %210 = vmatprep.subr.mxu0 0.0
  %211 = vmatpush1.msra.mxu0 0.0
  %212 = vmatprep.subr.mxu0 0.0
  %213 = vmatpush1.msra.mxu0 0.0
  %214 = vmatprep.mubr.f32.mxu0 0.0
  %215 = vmatmul.mubr.f32.gmra.mrb[0].mxu0 %v145
  %v216 = vpop.f32.mrb[0].mxu0
  %v217 = vadd.f32 0.0, %v216
  %v218 = vpop.f32.mrb[0].mxu0
  %219 = vmatprep.mubr.f32.mxu0 0.0
  %220 = vmatmul.mubr.f32.gmra.mrb[0].mxu0 %v148
  %v221 = vpop.f32.mrb[0].mxu0
  %v222 = vadd.f32 0.0, %v221
  %v223 = vpop.f32.mrb[0].mxu0
  %224 = vdwg.mxu0
  %225 = vset.pattern.permute.xlu0 2
  %226 = vperm.xlu0 %225, %v30
  %v227 = vpop.permute.xlu0 %226
  %228 = vset.pattern.permute.xlu0 2
  %229 = vperm.xlu0 %228, %v31
  %v230 = vpop.permute.xlu0 %229
  %vm231 = vcmp.eq.s32.totalorder %v33, %v227
  %vm232 = vcmp.eq.s32.totalorder %v33, %v230
  %v233 = vsel %vm231, 1, 0
  %v234 = vsel %vm232, 1, 0
  %v235 = vcvt.s32.f32 %v233
  %v236 = vcvt.s32.f32 %v234
  %v238 = vsel %vm46, %v235, 0
  %v241 = vsel %vm46, %v236, 0
  %243 = vmatprep.subr.mxu0 0.0
  %244 = vmatpush1.msra.mxu0 %v11
  %245 = vmatprep.subr.mxu0 0.0
  %246 = vmatpush1.msra.mxu0 %v12
  %247 = vmatprep.subr.mxu0 0.0
  %248 = vmatpush1.msra.mxu0 %v13
  %249 = vmatprep.subr.mxu0 0.0
  %250 = vmatpush1.msra.mxu0 %v14
  %251 = vmatprep.subr.mxu0 0.0
  %252 = vmatpush1.msra.mxu0 %v15
  %253 = vmatprep.subr.mxu0 0.0
  %254 = vmatpush1.msra.mxu0 %v16
  %255 = vmatprep.subr.mxu0 0.0
  %256 = vmatpush1.msra.mxu0 %v55
  %257 = vmatprep.subr.mxu0 0.0
  %258 = vmatpush1.msra.mxu0 0.0
  %259 = vmatprep.subr.mxu0 0.0
  %260 = vmatpush1.msra.mxu0 0.0
  %261 = vmatprep.subr.mxu0 0.0
  %262 = vmatpush1.msra.mxu0 0.0
  %263 = vmatprep.subr.mxu0 0.0
  %264 = vmatpush1.msra.mxu0 0.0
  %265 = vmatprep.subr.mxu0 0.0
  %266 = vmatpush1.msra.mxu0 0.0
  %267 = vmatprep.subr.mxu0 0.0
  %268 = vmatpush1.msra.mxu0 0.0
  %269 = vmatprep.subr.mxu0 0.0
  %270 = vmatpush1.msra.mxu0 0.0
  %271 = vmatprep.subr.mxu0 0.0
  %272 = vmatpush1.msra.mxu0 0.0
  %273 = vmatprep.subr.mxu0 0.0
  %274 = vmatpush1.msra.mxu0 0.0
  %275 = vmatprep.subr.mxu0 0.0
  %276 = vmatpush1.msra.mxu0 0.0
  %277 = vmatprep.subr.mxu0 0.0
  %278 = vmatpush1.msra.mxu0 0.0
  %279 = vmatprep.subr.mxu0 0.0
  %280 = vmatpush1.msra.mxu0 0.0
  %281 = vmatprep.subr.mxu0 0.0
  %282 = vmatpush1.msra.mxu0 0.0
  %283 = vmatprep.subr.mxu0 0.0
  %284 = vmatpush1.msra.mxu0 0.0
  %285 = vmatprep.subr.mxu0 0.0
  %286 = vmatpush1.msra.mxu0 0.0
  %287 = vmatprep.subr.mxu0 0.0
  %288 = vmatpush1.msra.mxu0 0.0
  %289 = vmatprep.subr.mxu0 0.0
  %290 = vmatpush1.msra.mxu0 0.0
  %291 = vmatprep.subr.mxu0 0.0
  %292 = vmatpush1.msra.mxu0 0.0
  %293 = vmatprep.subr.mxu0 0.0
  %294 = vmatpush1.msra.mxu0 0.0
  %295 = vmatprep.subr.mxu0 0.0
  %296 = vmatpush1.msra.mxu0 0.0
  %297 = vmatprep.subr.mxu0 0.0
  %298 = vmatpush1.msra.mxu0 0.0
  %299 = vmatprep.subr.mxu0 0.0
  %300 = vmatpush1.msra.mxu0 0.0
  %301 = vmatprep.subr.mxu0 0.0
  %302 = vmatpush1.msra.mxu0 0.0
  %303 = vmatprep.subr.mxu0 0.0
  %304 = vmatpush1.msra.mxu0 0.0
  %305 = vmatprep.subr.mxu0 0.0
  %306 = vmatpush1.msra.mxu0 0.0
  %307 = vmatprep.mubr.f32.mxu0 0.0
  %308 = vmatmul.mubr.f32.gmra.mrb[0].mxu0 %v238
  %v309 = vpop.f32.mrb[0].mxu0
  %v310 = vadd.f32 0.0, %v309
  %v311 = vpop.f32.mrb[0].mxu0
  %312 = vmatprep.mubr.f32.mxu0 0.0
  %313 = vmatmul.mubr.f32.gmra.mrb[0].mxu0 %v241
  %v314 = vpop.f32.mrb[0].mxu0
  %v315 = vadd.f32 0.0, %v314
  %v316 = vpop.f32.mrb[0].mxu0
  %317 = vdwg.mxu0
  %318 = vset.pattern.permute.xlu0 3
  %319 = vperm.xlu0 %318, %v30
  %v320 = vpop.permute.xlu0 %319
  %321 = vset.pattern.permute.xlu0 3
  %322 = vperm.xlu0 %321, %v31
  %v323 = vpop.permute.xlu0 %322
  %vm324 = vcmp.eq.s32.totalorder %v33, %v320
  %vm325 = vcmp.eq.s32.totalorder %v33, %v323
  %v326 = vsel %vm324, 1, 0
  %v327 = vsel %vm325, 1, 0
  %v328 = vcvt.s32.f32 %v326
  %v329 = vcvt.s32.f32 %v327
  %v331 = vsel %vm46, %v328, 0
  %v334 = vsel %vm46, %v329, 0
  %336 = vmatprep.subr.mxu0 0.0
  %337 = vmatpush1.msra.mxu0 %v11
  %338 = vmatprep.subr.mxu0 0.0
  %339 = vmatpush1.msra.mxu0 %v12
  %340 = vmatprep.subr.mxu0 0.0
  %341 = vmatpush1.msra.mxu0 %v13
  %342 = vmatprep.subr.mxu0 0.0
  %343 = vmatpush1.msra.mxu0 %v14
  %344 = vmatprep.subr.mxu0 0.0
  %345 = vmatpush1.msra.mxu0 %v15
  %346 = vmatprep.subr.mxu0 0.0
  %347 = vmatpush1.msra.mxu0 %v16
  %348 = vmatprep.subr.mxu0 0.0
  %349 = vmatpush1.msra.mxu0 %v55
  %350 = vmatprep.subr.mxu0 0.0
  %351 = vmatpush1.msra.mxu0 0.0
  %352 = vmatprep.subr.mxu0 0.0
  %353 = vmatpush1.msra.mxu0 0.0
  %354 = vmatprep.subr.mxu0 0.0
  %355 = vmatpush1.msra.mxu0 0.0
  %356 = vmatprep.subr.mxu0 0.0
  %357 = vmatpush1.msra.mxu0 0.0
  %358 = vmatprep.subr.mxu0 0.0
  %359 = vmatpush1.msra.mxu0 0.0
  %360 = vmatprep.subr.mxu0 0.0
  %361 = vmatpush1.msra.mxu0 0.0
  %362 = vmatprep.subr.mxu0 0.0
  %363 = vmatpush1.msra.mxu0 0.0
  %364 = vmatprep.subr.mxu0 0.0
  %365 = vmatpush1.msra.mxu0 0.0
  %366 = vmatprep.subr.mxu0 0.0
  %367 = vmatpush1.msra.mxu0 0.0
  %368 = vmatprep.subr.mxu0 0.0
  %369 = vmatpush1.msra.mxu0 0.0
  %370 = vmatprep.subr.mxu0 0.0
  %371 = vmatpush1.msra.mxu0 0.0
  %372 = vmatprep.subr.mxu0 0.0
  %373 = vmatpush1.msra.mxu0 0.0
  %374 = vmatprep.subr.mxu0 0.0
  %375 = vmatpush1.msra.mxu0 0.0
  %376 = vmatprep.subr.mxu0 0.0
  %377 = vmatpush1.msra.mxu0 0.0
  %378 = vmatprep.subr.mxu0 0.0
  %379 = vmatpush1.msra.mxu0 0.0
  %380 = vmatprep.subr.mxu0 0.0
  %381 = vmatpush1.msra.mxu0 0.0
  %382 = vmatprep.subr.mxu0 0.0
  %383 = vmatpush1.msra.mxu0 0.0
  %384 = vmatprep.subr.mxu0 0.0
  %385 = vmatpush1.msra.mxu0 0.0
  %386 = vmatprep.subr.mxu0 0.0
  %387 = vmatpush1.msra.mxu0 0.0
  %388 = vmatprep.subr.mxu0 0.0
  %389 = vmatpush1.msra.mxu0 0.0
  %390 = vmatprep.subr.mxu0 0.0
  %391 = vmatpush1.msra.mxu0 0.0
  %392 = vmatprep.subr.mxu0 0.0
  %393 = vmatpush1.msra.mxu0 0.0
  %394 = vmatprep.subr.mxu0 0.0
  %395 = vmatpush1.msra.mxu0 0.0
  %396 = vmatprep.subr.mxu0 0.0
  %397 = vmatpush1.msra.mxu0 0.0
  %398 = vmatprep.subr.mxu0 0.0
  %399 = vmatpush1.msra.mxu0 0.0
  %400 = vmatprep.mubr.f32.mxu0 0.0
  %401 = vmatmul.mubr.f32.gmra.mrb[0].mxu0 %v331
  %v402 = vpop.f32.mrb[0].mxu0
  %v403 = vadd.f32 0.0, %v402
  %v404 = vpop.f32.mrb[0].mxu0
  %405 = vmatprep.mubr.f32.mxu0 0.0
  %406 = vmatmul.mubr.f32.gmra.mrb[0].mxu0 %v334
  %v407 = vpop.f32.mrb[0].mxu0
  %v408 = vadd.f32 0.0, %v407
  %v409 = vpop.f32.mrb[0].mxu0
  %410 = vdwg.mxu0
  %411 = vset.pattern.permute.xlu0 4
  %412 = vperm.xlu0 %411, %v30
  %v413 = vpop.permute.xlu0 %412
  %414 = vset.pattern.permute.xlu0 4
  %415 = vperm.xlu0 %414, %v31
  %v416 = vpop.permute.xlu0 %415
  %vm417 = vcmp.eq.s32.totalorder %v33, %v413
  %vm418 = vcmp.eq.s32.totalorder %v33, %v416
  %v419 = vsel %vm417, 1, 0
  %v420 = vsel %vm418, 1, 0
  %v421 = vcvt.s32.f32 %v419
  %v422 = vcvt.s32.f32 %v420
  %v424 = vsel %vm46, %v421, 0
  %v427 = vsel %vm46, %v422, 0
  %429 = vmatprep.subr.mxu0 0.0
  %430 = vmatpush1.msra.mxu0 %v11
  %431 = vmatprep.subr.mxu0 0.0
  %432 = vmatpush1.msra.mxu0 %v12
  %433 = vmatprep.subr.mxu0 0.0
  %434 = vmatpush1.msra.mxu0 %v13
  %435 = vmatprep.subr.mxu0 0.0
  %436 = vmatpush1.msra.mxu0 %v14
  %437 = vmatprep.subr.mxu0 0.0
  %438 = vmatpush1.msra.mxu0 %v15
  %439 = vmatprep.subr.mxu0 0.0
  %440 = vmatpush1.msra.mxu0 %v16
  %441 = vmatprep.subr.mxu0 0.0
  %442 = vmatpush1.msra.mxu0 %v55
  %443 = vmatprep.subr.mxu0 0.0
  %444 = vmatpush1.msra.mxu0 0.0
  %445 = vmatprep.subr.mxu0 0.0
  %446 = vmatpush1.msra.mxu0 0.0
  %447 = vmatprep.subr.mxu0 0.0
  %448 = vmatpush1.msra.mxu0 0.0
  %449 = vmatprep.subr.mxu0 0.0
  %450 = vmatpush1.msra.mxu0 0.0
  %451 = vmatprep.subr.mxu0 0.0
  %452 = vmatpush1.msra.mxu0 0.0
  %453 = vmatprep.subr.mxu0 0.0
  %454 = vmatpush1.msra.mxu0 0.0
  %455 = vmatprep.subr.mxu0 0.0
  %456 = vmatpush1.msra.mxu0 0.0
  %457 = vmatprep.subr.mxu0 0.0
  %458 = vmatpush1.msra.mxu0 0.0
  %459 = vmatprep.subr.mxu0 0.0
  %460 = vmatpush1.msra.mxu0 0.0
  %461 = vmatprep.subr.mxu0 0.0
  %462 = vmatpush1.msra.mxu0 0.0
  %463 = vmatprep.subr.mxu0 0.0
  %464 = vmatpush1.msra.mxu0 0.0
  %465 = vmatprep.subr.mxu0 0.0
  %466 = vmatpush1.msra.mxu0 0.0
  %467 = vmatprep.subr.mxu0 0.0
  %468 = vmatpush1.msra.mxu0 0.0
  %469 = vmatprep.subr.mxu0 0.0
  %470 = vmatpush1.msra.mxu0 0.0
  %471 = vmatprep.subr.mxu0 0.0
  %472 = vmatpush1.msra.mxu0 0.0
  %473 = vmatprep.subr.mxu0 0.0
  %474 = vmatpush1.msra.mxu0 0.0
  %475 = vmatprep.subr.mxu0 0.0
  %476 = vmatpush1.msra.mxu0 0.0
  %477 = vmatprep.subr.mxu0 0.0
  %478 = vmatpush1.msra.mxu0 0.0
  %479 = vmatprep.subr.mxu0 0.0
  %480 = vmatpush1.msra.mxu0 0.0
  %481 = vmatprep.subr.mxu0 0.0
  %482 = vmatpush1.msra.mxu0 0.0
  %483 = vmatprep.subr.mxu0 0.0
  %484 = vmatpush1.msra.mxu0 0.0
  %485 = vmatprep.subr.mxu0 0.0
  %486 = vmatpush1.msra.mxu0 0.0
  %487 = vmatprep.subr.mxu0 0.0
  %488 = vmatpush1.msra.mxu0 0.0
  %489 = vmatprep.subr.mxu0 0.0
  %490 = vmatpush1.msra.mxu0 0.0
  %491 = vmatprep.subr.mxu0 0.0
  %492 = vmatpush1.msra.mxu0 0.0
  %493 = vmatprep.mubr.f32.mxu0 0.0
  %494 = vmatmul.mubr.f32.gmra.mrb[0].mxu0 %v424
  %v495 = vpop.f32.mrb[0].mxu0
  %v496 = vadd.f32 0.0, %v495
  %v497 = vpop.f32.mrb[0].mxu0
  %498 = vmatprep.mubr.f32.mxu0 0.0
  %499 = vmatmul.mubr.f32.gmra.mrb[0].mxu0 %v427
  %v500 = vpop.f32.mrb[0].mxu0
  %v501 = vadd.f32 0.0, %v500
  %v502 = vpop.f32.mrb[0].mxu0
  %503 = vdwg.mxu0
  %504 = vset.pattern.permute.xlu0 5
  %505 = vperm.xlu0 %504, %v30
  %v506 = vpop.permute.xlu0 %505
  %507 = vset.pattern.permute.xlu0 5
  %508 = vperm.xlu0 %507, %v31
  %v509 = vpop.permute.xlu0 %508
  %vm510 = vcmp.eq.s32.totalorder %v33, %v506
  %vm511 = vcmp.eq.s32.totalorder %v33, %v509
  %v512 = vsel %vm510, 1, 0
  %v513 = vsel %vm511, 1, 0
  %v514 = vcvt.s32.f32 %v512
  %v515 = vcvt.s32.f32 %v513
  %v517 = vsel %vm46, %v514, 0
  %v520 = vsel %vm46, %v515, 0
  %522 = vmatprep.subr.mxu0 0.0
  %523 = vmatpush1.msra.mxu0 %v11
  %524 = vmatprep.subr.mxu0 0.0
  %525 = vmatpush1.msra.mxu0 %v12
  %526 = vmatprep.subr.mxu0 0.0
  %527 = vmatpush1.msra.mxu0 %v13
  %528 = vmatprep.subr.mxu0 0.0
  %529 = vmatpush1.msra.mxu0 %v14
  %530 = vmatprep.subr.mxu0 0.0
  %531 = vmatpush1.msra.mxu0 %v15
  %532 = vmatprep.subr.mxu0 0.0
  %533 = vmatpush1.msra.mxu0 %v16
  %534 = vmatprep.subr.mxu0 0.0
  %535 = vmatpush1.msra.mxu0 %v55
  %536 = vmatprep.subr.mxu0 0.0
  %537 = vmatpush1.msra.mxu0 0.0
  %538 = vmatprep.subr.mxu0 0.0
  %539 = vmatpush1.msra.mxu0 0.0
  %540 = vmatprep.subr.mxu0 0.0
  %541 = vmatpush1.msra.mxu0 0.0
  %542 = vmatprep.subr.mxu0 0.0
  %543 = vmatpush1.msra.mxu0 0.0
  %544 = vmatprep.subr.mxu0 0.0
  %545 = vmatpush1.msra.mxu0 0.0
  %546 = vmatprep.subr.mxu0 0.0
  %547 = vmatpush1.msra.mxu0 0.0
  %548 = vmatprep.subr.mxu0 0.0
  %549 = vmatpush1.msra.mxu0 0.0
  %550 = vmatprep.subr.mxu0 0.0
  %551 = vmatpush1.msra.mxu0 0.0
  %552 = vmatprep.subr.mxu0 0.0
  %553 = vmatpush1.msra.mxu0 0.0
  %554 = vmatprep.subr.mxu0 0.0
  %555 = vmatpush1.msra.mxu0 0.0
  %556 = vmatprep.subr.mxu0 0.0
  %557 = vmatpush1.msra.mxu0 0.0
  %558 = vmatprep.subr.mxu0 0.0
  %559 = vmatpush1.msra.mxu0 0.0
  %560 = vmatprep.subr.mxu0 0.0
  %561 = vmatpush1.msra.mxu0 0.0
  %562 = vmatprep.subr.mxu0 0.0
  %563 = vmatpush1.msra.mxu0 0.0
  %564 = vmatprep.subr.mxu0 0.0
  %565 = vmatpush1.msra.mxu0 0.0
  %566 = vmatprep.subr.mxu0 0.0
  %567 = vmatpush1.msra.mxu0 0.0
  %568 = vmatprep.subr.mxu0 0.0
  %569 = vmatpush1.msra.mxu0 0.0
  %570 = vmatprep.subr.mxu0 0.0
  %571 = vmatpush1.msra.mxu0 0.0
  %572 = vmatprep.subr.mxu0 0.0
  %573 = vmatpush1.msra.mxu0 0.0
  %574 = vmatprep.subr.mxu0 0.0
  %575 = vmatpush1.msra.mxu0 0.0
  %576 = vmatprep.subr.mxu0 0.0
  %577 = vmatpush1.msra.mxu0 0.0
  %578 = vmatprep.subr.mxu0 0.0
  %579 = vmatpush1.msra.mxu0 0.0
  %580 = vmatprep.subr.mxu0 0.0
  %581 = vmatpush1.msra.mxu0 0.0
  %582 = vmatprep.subr.mxu0 0.0
  %583 = vmatpush1.msra.mxu0 0.0
  %584 = vmatprep.subr.mxu0 0.0
  %585 = vmatpush1.msra.mxu0 0.0
  %586 = vmatprep.mubr.f32.mxu0 0.0
  %587 = vmatmul.mubr.f32.gmra.mrb[0].mxu0 %v517
  %v588 = vpop.f32.mrb[0].mxu0
  %v589 = vadd.f32 0.0, %v588
  %v590 = vpop.f32.mrb[0].mxu0
  %591 = vmatprep.mubr.f32.mxu0 0.0
  %592 = vmatmul.mubr.f32.gmra.mrb[0].mxu0 %v520
  %v593 = vpop.f32.mrb[0].mxu0
  %v594 = vadd.f32 0.0, %v593
  %v595 = vpop.f32.mrb[0].mxu0
  %596 = vdwg.mxu0
  %v597 = vmax.f32 %v124, %v217
  %v598 = vmax.f32 %v129, %v222
  %v599 = vmax.f32 %v597, %v310
  %v600 = vmax.f32 %v598, %v315
  %v601 = vmax.f32 %v599, %v403
  %v602 = vmax.f32 %v600, %v408
  %v603 = vmax.f32 %v601, %v496
  %v604 = vmax.f32 %v602, %v501
  %v605 = vmax.f32 %v603, %v589
  %v606 = vmax.f32 %v604, %v594
  %v607 = vlaneseq
  %v608 = vshrl.u32 %v607, 7
  %v609 = vsub.s32 0, %v608
  %v610 = vrot.slane %v26, %v609
  %v611 = vadd.f32 %v605, %v610
  %v612 = vadd.f32 %v606, %v610
  %v613 = vmax.f32 %v611, 0.0
  %v614 = vmax.f32 %v612, 0.0
  %617 = vrot.lane.b32.xlu0 %v217, 120
  %v618 = vpop.permute.xlu0 %617
  %619 = vrot.lane.b32.xlu0 %v222, 120
  %v620 = vpop.permute.xlu0 %619
  %v623 = vadd.f32 %v124, %v618
  %v624 = vadd.f32 %v129, %v620
  %627 = vrot.lane.b32.xlu0 %v310, 120
  %v628 = vpop.permute.xlu0 %627
  %629 = vrot.lane.b32.xlu0 %v315, 120
  %v630 = vpop.permute.xlu0 %629
  %v633 = vadd.f32 %v217, %v628
  %v634 = vadd.f32 %v222, %v630
  %v635 = vmax.f32 %v623, %v633
  %v636 = vmax.f32 %v624, %v634
  %639 = vrot.lane.b32.xlu0 %v403, 120
  %v640 = vpop.permute.xlu0 %639
  %641 = vrot.lane.b32.xlu0 %v408, 120
  %v642 = vpop.permute.xlu0 %641
  %v645 = vadd.f32 %v310, %v640
  %v646 = vadd.f32 %v315, %v642
  %v647 = vmax.f32 %v635, %v645
  %v648 = vmax.f32 %v636, %v646
  %651 = vrot.lane.b32.xlu0 %v496, 120
  %v652 = vpop.permute.xlu0 %651
  %653 = vrot.lane.b32.xlu0 %v501, 120
  %v654 = vpop.permute.xlu0 %653
  %v657 = vadd.f32 %v403, %v652
  %v658 = vadd.f32 %v408, %v654
  %v659 = vmax.f32 %v647, %v657
  %v660 = vmax.f32 %v648, %v658
  %663 = vrot.lane.b32.xlu0 %v589, 120
  %v664 = vpop.permute.xlu0 %663
  %665 = vrot.lane.b32.xlu0 %v594, 120
  %v666 = vpop.permute.xlu0 %665
  %v669 = vadd.f32 %v496, %v664
  %v670 = vadd.f32 %v501, %v666
  %v671 = vmax.f32 %v659, %v669
  %v672 = vmax.f32 %v660, %v670
  %v673 = vadd.f32 %v671, %v610
  %v674 = vadd.f32 %v672, %v610
  %v675 = vmax.f32 %v673, 0.0
  %v676 = vmax.f32 %v674, 0.0
  %679 = vrot.lane.b32.xlu0 %v675, 120
  %v680 = vpop.permute.xlu0 %679
  %681 = vrot.lane.b32.xlu0 %v676, 120
  %v682 = vpop.permute.xlu0 %681
  %vm683 = vcmask 64512
  %v684 = vsel %vm683, %v680, 0
  %v686 = vsel %vm683, %v682, 0
  %688 = vmatprep.subr.mxu0 0.0
  %689 = vmatpush1.msra.mxu0 %v19
  %690 = vmatprep.subr.mxu0 0.0
  %691 = vmatpush1.msra.mxu0 0.0
  %692 = vmatprep.subr.mxu0 0.0
  %693 = vmatpush1.msra.mxu0 0.0
  %694 = vmatprep.subr.mxu0 0.0
  %695 = vmatpush1.msra.mxu0 0.0
  %696 = vmatprep.subr.mxu0 0.0
  %697 = vmatpush1.msra.mxu0 0.0
  %698 = vmatprep.subr.mxu0 0.0
  %699 = vmatpush1.msra.mxu0 0.0
  %700 = vmatprep.subr.mxu0 0.0
  %701 = vmatpush1.msra.mxu0 0.0
  %702 = vmatprep.subr.mxu0 0.0
  %703 = vmatpush1.msra.mxu0 0.0
  %704 = vmatprep.subr.mxu0 0.0
  %705 = vmatpush1.msra.mxu0 0.0
  %706 = vmatprep.subr.mxu0 0.0
  %707 = vmatpush1.msra.mxu0 0.0
  %708 = vmatprep.subr.mxu0 0.0
  %709 = vmatpush1.msra.mxu0 0.0
  %710 = vmatprep.subr.mxu0 0.0
  %711 = vmatpush1.msra.mxu0 0.0
  %712 = vmatprep.subr.mxu0 0.0
  %713 = vmatpush1.msra.mxu0 0.0
  %714 = vmatprep.subr.mxu0 0.0
  %715 = vmatpush1.msra.mxu0 0.0
  %716 = vmatprep.subr.mxu0 0.0
  %717 = vmatpush1.msra.mxu0 0.0
  %718 = vmatprep.subr.mxu0 0.0
  %719 = vmatpush1.msra.mxu0 0.0
  %720 = vmatprep.subr.mxu0 0.0
  %721 = vmatpush1.msra.mxu0 0.0
  %722 = vmatprep.subr.mxu0 0.0
  %723 = vmatpush1.msra.mxu0 0.0
  %724 = vmatprep.subr.mxu0 0.0
  %725 = vmatpush1.msra.mxu0 0.0
  %726 = vmatprep.subr.mxu0 0.0
  %727 = vmatpush1.msra.mxu0 0.0
  %728 = vmatprep.subr.mxu0 0.0
  %729 = vmatpush1.msra.mxu0 0.0
  %730 = vmatprep.subr.mxu0 0.0
  %731 = vmatpush1.msra.mxu0 0.0
  %732 = vmatprep.subr.mxu0 0.0
  %733 = vmatpush1.msra.mxu0 0.0
  %734 = vmatprep.subr.mxu0 0.0
  %735 = vmatpush1.msra.mxu0 0.0
  %736 = vmatprep.subr.mxu0 0.0
  %737 = vmatpush1.msra.mxu0 0.0
  %738 = vmatprep.subr.mxu0 0.0
  %739 = vmatpush1.msra.mxu0 0.0
  %740 = vmatprep.subr.mxu0 0.0
  %741 = vmatpush1.msra.mxu0 0.0
  %742 = vmatprep.subr.mxu0 0.0
  %743 = vmatpush1.msra.mxu0 0.0
  %744 = vmatprep.subr.mxu0 0.0
  %745 = vmatpush1.msra.mxu0 0.0
  %746 = vmatprep.subr.mxu0 0.0
  %747 = vmatpush1.msra.mxu0 0.0
  %748 = vmatprep.subr.mxu0 0.0
  %749 = vmatpush1.msra.mxu0 0.0
  %750 = vmatprep.subr.mxu0 0.0
  %751 = vmatpush1.msra.mxu0 0.0
  %752 = vmatprep.mubr.f32.mxu0 0.0
  %753 = vmatmul.mubr.f32.gmra.mrb[0].mxu0 %v684
  %v754 = vpop.f32.mrb[0].mxu0
  %v755 = vadd.f32 0.0, %v754
  %v756 = vpop.f32.mrb[0].mxu0
  %757 = vmatprep.mubr.f32.mxu0 0.0
  %758 = vmatmul.mubr.f32.gmra.mrb[0].mxu0 %v686
  %v759 = vpop.f32.mrb[0].mxu0
  %v760 = vadd.f32 0.0, %v759
  %v761 = vpop.f32.mrb[0].mxu0
  %762 = vdwg.mxu0
  %v764 = vsel %vm683, %v613, 0
  %v767 = vsel %vm683, %v614, 0
  %769 = vmatprep.subr.mxu0 0.0
  %770 = vmatpush1.msra.mxu0 %v18
  %771 = vmatprep.subr.mxu0 0.0
  %772 = vmatpush1.msra.mxu0 0.0
  %773 = vmatprep.subr.mxu0 0.0
  %774 = vmatpush1.msra.mxu0 0.0
  %775 = vmatprep.subr.mxu0 0.0
  %776 = vmatpush1.msra.mxu0 0.0
  %777 = vmatprep.subr.mxu0 0.0
  %778 = vmatpush1.msra.mxu0 0.0
  %779 = vmatprep.subr.mxu0 0.0
  %780 = vmatpush1.msra.mxu0 0.0
  %781 = vmatprep.subr.mxu0 0.0
  %782 = vmatpush1.msra.mxu0 0.0
  %783 = vmatprep.subr.mxu0 0.0
  %784 = vmatpush1.msra.mxu0 0.0
  %785 = vmatprep.subr.mxu0 0.0
  %786 = vmatpush1.msra.mxu0 0.0
  %787 = vmatprep.subr.mxu0 0.0
  %788 = vmatpush1.msra.mxu0 0.0
  %789 = vmatprep.subr.mxu0 0.0
  %790 = vmatpush1.msra.mxu0 0.0
  %791 = vmatprep.subr.mxu0 0.0
  %792 = vmatpush1.msra.mxu0 0.0
  %793 = vmatprep.subr.mxu0 0.0
  %794 = vmatpush1.msra.mxu0 0.0
  %795 = vmatprep.subr.mxu0 0.0
  %796 = vmatpush1.msra.mxu0 0.0
  %797 = vmatprep.subr.mxu0 0.0
  %798 = vmatpush1.msra.mxu0 0.0
  %799 = vmatprep.subr.mxu0 0.0
  %800 = vmatpush1.msra.mxu0 0.0
  %801 = vmatprep.subr.mxu0 0.0
  %802 = vmatpush1.msra.mxu0 0.0
  %803 = vmatprep.subr.mxu0 0.0
  %804 = vmatpush1.msra.mxu0 0.0
  %805 = vmatprep.subr.mxu0 0.0
  %806 = vmatpush1.msra.mxu0 0.0
  %807 = vmatprep.subr.mxu0 0.0
  %808 = vmatpush1.msra.mxu0 0.0
  %809 = vmatprep.subr.mxu0 0.0
  %810 = vmatpush1.msra.mxu0 0.0
  %811 = vmatprep.subr.mxu0 0.0
  %812 = vmatpush1.msra.mxu0 0.0
  %813 = vmatprep.subr.mxu0 0.0
  %814 = vmatpush1.msra.mxu0 0.0
  %815 = vmatprep.subr.mxu0 0.0
  %816 = vmatpush1.msra.mxu0 0.0
  %817 = vmatprep.subr.mxu0 0.0
  %818 = vmatpush1.msra.mxu0 0.0
  %819 = vmatprep.subr.mxu0 0.0
  %820 = vmatpush1.msra.mxu0 0.0
  %821 = vmatprep.subr.mxu0 0.0
  %822 = vmatpush1.msra.mxu0 0.0
  %823 = vmatprep.subr.mxu0 0.0
  %824 = vmatpush1.msra.mxu0 0.0
  %825 = vmatprep.subr.mxu0 0.0
  %826 = vmatpush1.msra.mxu0 0.0
  %827 = vmatprep.subr.mxu0 0.0
  %828 = vmatpush1.msra.mxu0 0.0
  %829 = vmatprep.subr.mxu0 0.0
  %830 = vmatpush1.msra.mxu0 0.0
  %831 = vmatprep.subr.mxu0 0.0
  %832 = vmatpush1.msra.mxu0 0.0
  %833 = vmatprep.mubr.f32.mxu0 0.0
  %834 = vmatmul.mubr.f32.gmra.mrb[0].mxu0 %v764
  %v835 = vpop.f32.mrb[0].mxu0
  %v836 = vadd.f32 %v755, %v835
  %v837 = vpop.f32.mrb[0].mxu0
  %838 = vmatprep.mubr.f32.mxu0 0.0
  %839 = vmatmul.mubr.f32.gmra.mrb[0].mxu0 %v767
  %v840 = vpop.f32.mrb[0].mxu0
  %v841 = vadd.f32 %v760, %v840
  %v842 = vpop.f32.mrb[0].mxu0
  %843 = vdwg.mxu0
  %v846 = vcombine.high %v836, %v836
  %v847 = vcombine.high %v841, %v841
  %vm850 = vcmask 60416
  %v851 = vsel %vm850, %v836, -inf
  %v852 = vrot.slane %v851, 4
  %v853 = vmax.f32 %v851, %v852
  %v854 = vrot.slane %v853, 2
  %v855 = vmax.f32 %v853, %v854
  %v856 = vrot.slane %v855, 1
  %v857 = vmax.f32 %v855, %v856
  %v858 = vsel %vm850, %v846, -inf
  %v859 = vrot.slane %v858, 4
  %v860 = vmax.f32 %v858, %v859
  %v861 = vrot.slane %v860, 2
  %v862 = vmax.f32 %v860, %v861
  %v863 = vrot.slane %v862, 1
  %v864 = vmax.f32 %v862, %v863
  %v865 = vsel %vm850, %v841, -inf
  %v866 = vrot.slane %v865, 4
  %v867 = vmax.f32 %v865, %v866
  %v868 = vrot.slane %v867, 2
  %v869 = vmax.f32 %v867, %v868
  %v870 = vrot.slane %v869, 1
  %v871 = vmax.f32 %v869, %v870
  %v872 = vsel %vm850, %v847, -inf
  %v873 = vrot.slane %v872, 4
  %v874 = vmax.f32 %v872, %v873
  %v875 = vrot.slane %v874, 2
  %v876 = vmax.f32 %v874, %v875
  %v877 = vrot.slane %v876, 1
  %v878 = vmax.f32 %v876, %v877
  %v879 = vlaneseq
  %v880 = vshrl.u32 %v879, 7
  %v881 = vsub.s32 0, %v880
  %v882 = vrot.slane %v27, %v881
  %v883 = vadd.f32 %v857, %v882
  %v884 = vadd.f32 %v864, %v882
  %v885 = vadd.f32 %v871, %v882
  %v886 = vadd.f32 %v878, %v882
  %v887 = vmax.f32 %v883, 0.0
  %v888 = vmax.f32 %v884, 0.0
  %v889 = vmax.f32 %v885, 0.0
  %v890 = vmax.f32 %v886, 0.0
  %v891 = vsub.f32 %v887, %v888
  %v892 = vsub.f32 %v889, %v890
  %v893 = vrot.slane %v836, 5
  %v894 = vrot.slane %v893, 4
  %v895 = vrot.slane %v846, 5
  %v896 = vrot.slane %v895, 4
  %v897 = vrot.slane %v841, 5
  %v898 = vrot.slane %v897, 4
  %v899 = vrot.slane %v847, 5
  %v900 = vrot.slane %v899, 4
  %901 = vrot.lane.b32.xlu0 %v894, 120
  %v902 = vpop.permute.xlu0 %901
  %903 = vrot.lane.b32.xlu0 %v896, 120
  %v904 = vpop.permute.xlu0 %903
  %905 = vrot.lane.b32.xlu0 %v898, 120
  %v906 = vpop.permute.xlu0 %905
  %907 = vrot.lane.b32.xlu0 %v900, 120
  %v908 = vpop.permute.xlu0 %907
  %v913 = vadd.f32 %v836, %v902
  %v914 = vadd.f32 %v846, %v904
  %v915 = vadd.f32 %v841, %v906
  %v916 = vadd.f32 %v847, %v908
  %vm917 = vcmask 124992
  %v918 = vsel %vm917, %v913, -inf
  %v919 = vrot.slane %v918, 4
  %v920 = vmax.f32 %v918, %v919
  %v921 = vrot.slane %v920, 2
  %v922 = vmax.f32 %v920, %v921
  %v923 = vrot.slane %v922, 1
  %v924 = vmax.f32 %v922, %v923
  %v925 = vsel %vm917, %v914, -inf
  %v926 = vrot.slane %v925, 4
  %v927 = vmax.f32 %v925, %v926
  %v928 = vrot.slane %v927, 2
  %v929 = vmax.f32 %v927, %v928
  %v930 = vrot.slane %v929, 1
  %v931 = vmax.f32 %v929, %v930
  %v932 = vsel %vm917, %v915, -inf
  %v933 = vrot.slane %v932, 4
  %v934 = vmax.f32 %v932, %v933
  %v935 = vrot.slane %v934, 2
  %v936 = vmax.f32 %v934, %v935
  %v937 = vrot.slane %v936, 1
  %v938 = vmax.f32 %v936, %v937
  %v939 = vsel %vm917, %v916, -inf
  %v940 = vrot.slane %v939, 4
  %v941 = vmax.f32 %v939, %v940
  %v942 = vrot.slane %v941, 2
  %v943 = vmax.f32 %v941, %v942
  %v944 = vrot.slane %v943, 1
  %v945 = vmax.f32 %v943, %v944
  %v946 = vadd.f32 %v924, %v882
  %v947 = vadd.f32 %v931, %v882
  %v948 = vadd.f32 %v938, %v882
  %v949 = vadd.f32 %v945, %v882
  %v950 = vmax.f32 %v946, 0.0
  %v951 = vmax.f32 %v947, 0.0
  %v952 = vmax.f32 %v948, 0.0
  %v953 = vmax.f32 %v949, 0.0
  %v954 = vsub.f32 %v950, %v951
  %v955 = vsub.f32 %v952, %v953
  %v958 = vrot.slane %v955, 7
  %vm959 = vcmask 1041409
  %v960 = vsel %vm959, %v958, %v954
  %961 = vrot.lane.b32.xlu0 %v960, 120
  %v962 = vpop.permute.xlu0 %961
  %v963 = vsel %vm683, %v962, 0
  %965 = vmatprep.subr.mxu0 0.0
  %966 = vmatpush1.msra.mxu0 %v21
  %967 = vmatprep.subr.mxu0 0.0
  %968 = vmatpush1.msra.mxu0 0.0
  %969 = vmatprep.subr.mxu0 0.0
  %970 = vmatpush1.msra.mxu0 0.0
  %971 = vmatprep.subr.mxu0 0.0
  %972 = vmatpush1.msra.mxu0 0.0
  %973 = vmatprep.subr.mxu0 0.0
  %974 = vmatpush1.msra.mxu0 0.0
  %975 = vmatprep.subr.mxu0 0.0
  %976 = vmatpush1.msra.mxu0 0.0
  %977 = vmatprep.subr.mxu0 0.0
  %978 = vmatpush1.msra.mxu0 0.0
  %979 = vmatprep.subr.mxu0 0.0
  %980 = vmatpush1.msra.mxu0 0.0
  %981 = vmatprep.subr.mxu0 0.0
  %982 = vmatpush1.msra.mxu0 0.0
  %983 = vmatprep.subr.mxu0 0.0
  %984 = vmatpush1.msra.mxu0 0.0
  %985 = vmatprep.subr.mxu0 0.0
  %986 = vmatpush1.msra.mxu0 0.0
  %987 = vmatprep.subr.mxu0 0.0
  %988 = vmatpush1.msra.mxu0 0.0
  %989 = vmatprep.subr.mxu0 0.0
  %990 = vmatpush1.msra.mxu0 0.0
  %991 = vmatprep.subr.mxu0 0.0
  %992 = vmatpush1.msra.mxu0 0.0
  %993 = vmatprep.subr.mxu0 0.0
  %994 = vmatpush1.msra.mxu0 0.0
  %995 = vmatprep.subr.mxu0 0.0
  %996 = vmatpush1.msra.mxu0 0.0
  %997 = vmatprep.subr.mxu0 0.0
  %998 = vmatpush1.msra.mxu0 0.0
  %999 = vmatprep.subr.mxu0 0.0
  %1000 = vmatpush1.msra.mxu0 0.0
  %1001 = vmatprep.subr.mxu0 0.0
  %1002 = vmatpush1.msra.mxu0 0.0
  %1003 = vmatprep.subr.mxu0 0.0
  %1004 = vmatpush1.msra.mxu0 0.0
  %1005 = vmatprep.subr.mxu0 0.0
  %1006 = vmatpush1.msra.mxu0 0.0
  %1007 = vmatprep.subr.mxu0 0.0
  %1008 = vmatpush1.msra.mxu0 0.0
  %1009 = vmatprep.subr.mxu0 0.0
  %1010 = vmatpush1.msra.mxu0 0.0
  %1011 = vmatprep.subr.mxu0 0.0
  %1012 = vmatpush1.msra.mxu0 0.0
  %1013 = vmatprep.subr.mxu0 0.0
  %1014 = vmatpush1.msra.mxu0 0.0
  %1015 = vmatprep.subr.mxu0 0.0
  %1016 = vmatpush1.msra.mxu0 0.0
  %1017 = vmatprep.subr.mxu0 0.0
  %1018 = vmatpush1.msra.mxu0 0.0
  %1019 = vmatprep.subr.mxu0 0.0
  %1020 = vmatpush1.msra.mxu0 0.0
  %1021 = vmatprep.subr.mxu0 0.0
  %1022 = vmatpush1.msra.mxu0 0.0
  %1023 = vmatprep.subr.mxu0 0.0
  %1024 = vmatpush1.msra.mxu0 0.0
  %1025 = vmatprep.subr.mxu0 0.0
  %1026 = vmatpush1.msra.mxu0 0.0
  %1027 = vmatprep.subr.mxu0 0.0
  %1028 = vmatpush1.msra.mxu0 0.0
  %1029 = vmatprep.mubr.f32.mxu0 0.0
  %1030 = vmatmul.mubr.f32.gmra.mrb[0].mxu0 %v963
  %v1031 = vpop.f32.mrb[0].mxu0
  %v1032 = vadd.f32 0.0, %v1031
  %v1033 = vpop.f32.mrb[0].mxu0
  %1034 = vdwg.mxu0
  %v1037 = vrot.slane %v892, 7
  %v1038 = vsel %vm959, %v1037, %v891
  %v1039 = vsel %vm683, %v1038, 0
  %1041 = vmatprep.subr.mxu0 0.0
  %1042 = vmatpush1.msra.mxu0 %v20
  %1043 = vmatprep.subr.mxu0 0.0
  %1044 = vmatpush1.msra.mxu0 0.0
  %1045 = vmatprep.subr.mxu0 0.0
  %1046 = vmatpush1.msra.mxu0 0.0
  %1047 = vmatprep.subr.mxu0 0.0
  %1048 = vmatpush1.msra.mxu0 0.0
  %1049 = vmatprep.subr.mxu0 0.0
  %1050 = vmatpush1.msra.mxu0 0.0
  %1051 = vmatprep.subr.mxu0 0.0
  %1052 = vmatpush1.msra.mxu0 0.0
  %1053 = vmatprep.subr.mxu0 0.0
  %1054 = vmatpush1.msra.mxu0 0.0
  %1055 = vmatprep.subr.mxu0 0.0
  %1056 = vmatpush1.msra.mxu0 0.0
  %1057 = vmatprep.subr.mxu0 0.0
  %1058 = vmatpush1.msra.mxu0 0.0
  %1059 = vmatprep.subr.mxu0 0.0
  %1060 = vmatpush1.msra.mxu0 0.0
  %1061 = vmatprep.subr.mxu0 0.0
  %1062 = vmatpush1.msra.mxu0 0.0
  %1063 = vmatprep.subr.mxu0 0.0
  %1064 = vmatpush1.msra.mxu0 0.0
  %1065 = vmatprep.subr.mxu0 0.0
  %1066 = vmatpush1.msra.mxu0 0.0
  %1067 = vmatprep.subr.mxu0 0.0
  %1068 = vmatpush1.msra.mxu0 0.0
  %1069 = vmatprep.subr.mxu0 0.0
  %1070 = vmatpush1.msra.mxu0 0.0
  %1071 = vmatprep.subr.mxu0 0.0
  %1072 = vmatpush1.msra.mxu0 0.0
  %1073 = vmatprep.subr.mxu0 0.0
  %1074 = vmatpush1.msra.mxu0 0.0
  %1075 = vmatprep.subr.mxu0 0.0
  %1076 = vmatpush1.msra.mxu0 0.0
  %1077 = vmatprep.subr.mxu0 0.0
  %1078 = vmatpush1.msra.mxu0 0.0
  %1079 = vmatprep.subr.mxu0 0.0
  %1080 = vmatpush1.msra.mxu0 0.0
  %1081 = vmatprep.subr.mxu0 0.0
  %1082 = vmatpush1.msra.mxu0 0.0
  %1083 = vmatprep.subr.mxu0 0.0
  %1084 = vmatpush1.msra.mxu0 0.0
  %1085 = vmatprep.subr.mxu0 0.0
  %1086 = vmatpush1.msra.mxu0 0.0
  %1087 = vmatprep.subr.mxu0 0.0
  %1088 = vmatpush1.msra.mxu0 0.0
  %1089 = vmatprep.subr.mxu0 0.0
  %1090 = vmatpush1.msra.mxu0 0.0
  %1091 = vmatprep.subr.mxu0 0.0
  %1092 = vmatpush1.msra.mxu0 0.0
  %1093 = vmatprep.subr.mxu0 0.0
  %1094 = vmatpush1.msra.mxu0 0.0
  %1095 = vmatprep.subr.mxu0 0.0
  %1096 = vmatpush1.msra.mxu0 0.0
  %1097 = vmatprep.subr.mxu0 0.0
  %1098 = vmatpush1.msra.mxu0 0.0
  %1099 = vmatprep.subr.mxu0 0.0
  %1100 = vmatpush1.msra.mxu0 0.0
  %1101 = vmatprep.subr.mxu0 0.0
  %1102 = vmatpush1.msra.mxu0 0.0
  %1103 = vmatprep.subr.mxu0 0.0
  %1104 = vmatpush1.msra.mxu0 0.0
  %1105 = vmatprep.mubr.f32.mxu0 0.0
  %1106 = vmatmul.mubr.f32.gmra.mrb[0].mxu0 %v1039
  %v1107 = vpop.f32.mrb[0].mxu0
  %v1108 = vadd.f32 %v1032, %v1107
  %v1109 = vpop.f32.mrb[0].mxu0
  %1110 = vdwg.mxu0
  %v1111 = vlaneseq
  %v1112 = vshrl.u32 %v1111, 7
  %v1113 = vsub.s32 0, %v1112
  %v1114 = vrot.slane %v28, %v1113
  %v1115 = vadd.f32 %v1108, %v1114
  %v1116 = vmax.f32 %v1115, 0.0
  %v1117 = vlaneseq
  %v1118 = vshrl.u32 %v1117, 7
  %v1119 = vsub.s32 0, %v1118
  %v1120 = vrot.slane %v29, %v1119
  %vm1121 = vcmask 261120
  %v1123 = vsel %vm1121, %v1116, 0
  %1125 = vmatprep.subr.mxu0 0.0
  %1126 = vmatpush1.msra.mxu0 %v22
  %1127 = vmatprep.subr.mxu0 0.0
  %1128 = vmatpush1.msra.mxu0 %v23
  %1129 = vmatprep.subr.mxu0 0.0
  %1130 = vmatpush1.msra.mxu0 %v24
  %1131 = vmatprep.subr.mxu0 0.0
  %1132 = vmatpush1.msra.mxu0 %v25
  %1133 = vmatprep.subr.mxu0 0.0
  %1134 = vmatpush1.msra.mxu0 0.0
  %1135 = vmatprep.subr.mxu0 0.0
  %1136 = vmatpush1.msra.mxu0 0.0
  %1137 = vmatprep.subr.mxu0 0.0
  %1138 = vmatpush1.msra.mxu0 0.0
  %1139 = vmatprep.subr.mxu0 0.0
  %1140 = vmatpush1.msra.mxu0 0.0
  %1141 = vmatprep.subr.mxu0 0.0
  %1142 = vmatpush1.msra.mxu0 0.0
  %1143 = vmatprep.subr.mxu0 0.0
  %1144 = vmatpush1.msra.mxu0 0.0
  %1145 = vmatprep.subr.mxu0 0.0
  %1146 = vmatpush1.msra.mxu0 0.0
  %1147 = vmatprep.subr.mxu0 0.0
  %1148 = vmatpush1.msra.mxu0 0.0
  %1149 = vmatprep.subr.mxu0 0.0
  %1150 = vmatpush1.msra.mxu0 0.0
  %1151 = vmatprep.subr.mxu0 0.0
  %1152 = vmatpush1.msra.mxu0 0.0
  %1153 = vmatprep.subr.mxu0 0.0
  %1154 = vmatpush1.msra.mxu0 0.0
  %1155 = vmatprep.subr.mxu0 0.0
  %1156 = vmatpush1.msra.mxu0 0.0
  %1157 = vmatprep.subr.mxu0 0.0
  %1158 = vmatpush1.msra.mxu0 0.0
  %1159 = vmatprep.subr.mxu0 0.0
  %1160 = vmatpush1.msra.mxu0 0.0
  %1161 = vmatprep.subr.mxu0 0.0
  %1162 = vmatpush1.msra.mxu0 0.0
  %1163 = vmatprep.subr.mxu0 0.0
  %1164 = vmatpush1.msra.mxu0 0.0
  %1165 = vmatprep.subr.mxu0 0.0
  %1166 = vmatpush1.msra.mxu0 0.0
  %1167 = vmatprep.subr.mxu0 0.0
  %1168 = vmatpush1.msra.mxu0 0.0
  %1169 = vmatprep.subr.mxu0 0.0
  %1170 = vmatpush1.msra.mxu0 0.0
  %1171 = vmatprep.subr.mxu0 0.0
  %1172 = vmatpush1.msra.mxu0 0.0
  %1173 = vmatprep.subr.mxu0 0.0
  %1174 = vmatpush1.msra.mxu0 0.0
  %1175 = vmatprep.subr.mxu0 0.0
  %1176 = vmatpush1.msra.mxu0 0.0
  %1177 = vmatprep.subr.mxu0 0.0
  %1178 = vmatpush1.msra.mxu0 0.0
  %1179 = vmatprep.subr.mxu0 0.0
  %1180 = vmatpush1.msra.mxu0 0.0
  %1181 = vmatprep.subr.mxu0 0.0
  %1182 = vmatpush1.msra.mxu0 0.0
  %1183 = vmatprep.subr.mxu0 0.0
  %1184 = vmatpush1.msra.mxu0 0.0
  %1185 = vmatprep.subr.mxu0 0.0
  %1186 = vmatpush1.msra.mxu0 0.0
  %1187 = vmatprep.subr.mxu0 0.0
  %1188 = vmatpush1.msra.mxu0 0.0
  %1189 = vmatprep.mubr.f32.mxu0 0.0
  %1190 = vmatmul.mubr.f32.gmra.mrb[0].mxu0 %v1123
  %v1191 = vpop.f32.mrb[0].mxu0
  %v1192 = vadd.f32 %v1120, %v1191
  %v1193 = vpop.f32.mrb[0].mxu0
  %1194 = vdwg.mxu0
  %v1195 = vsub.f32 0.0, %v1192
  %v1196 = vmul.f32 %v1195, 1.442695
  %v1197 = vpow.pop %v1196
  %v1198 = vadd.f32 %v1197, 1.0
  %v1199 = vrcp.pop %v1198
  %v1200 = vmul.f32 1.0, %v1199
  %vm1201 = vcmask 1024
  %1202 = vst.msk [vmem:[%s2] sm:$0x3] %vm1201, %v1200
  // Predicated region
  $region10: #{tpu_custom_call.1} parent=0 // pred_check
    _
  $region11: #{tpu_custom_call.1} parent=0 // pred_check_branch
    %1204 = sbr.rel (0) target = $region13
  $region12: #{tpu_custom_call.1} parent=0 // pred_region
    _
  $region13: #{tpu_custom_call.1} parent=0 // pred_fallthru
    _
  // Predicated region
  $region14: #{tpu_custom_call.1} parent=0 // pred_check
    _
  $region15: #{tpu_custom_call.1} parent=0 // pred_check_branch
    %1206 = sbr.rel (0) target = $region17
  $region16: #{tpu_custom_call.1} parent=0 // pred_region
    _
  $region17: #{tpu_custom_call.1} parent=0 // pred_fallthru
    _

</llo_original>
